<compile_context>
chip_gen: v7x
topology: tpu7x:2x2x1
jax: 0.10.0
libtpu: 0.0.40
codegen_flags: <defaults>
</compile_context>

<pallas_src>
import functools

import numpy as np
import jax
import jax.numpy as jnp
from jax import lax
from jax.experimental import pallas as pl
from jax.experimental.pallas import tpu as pltpu


DILATIONS = (1, 2, 3, 4, 3, 2, 1)
PADH = 8  # H-halo rows on each side (>= max dilation 4, sublane-tile aligned)


# ------------------------------ Pallas kernel -------------------------------

def _mdcl_fused_kernel(x_ref, w3_ref, b3_ref, w1_ref, b1_ref, o_ref, act,
                       *, H, LANES):
    """Fused mDCl forward for one lane-packed pair of images.

    x_ref : (1, H, LANES)              input rows, lanes = (img, w, c)
    w3_ref: (7, 3*LANES, LANES)        per-stage kh-concatenated folded weights
    b3_ref: (7, 1, LANES)              per-stage bias tiled along (img, w)
    w1_ref: (LANES, LANES)             block-diagonal 1x1 conv weights
    b1_ref: (1, LANES)                 1x1 bias tiled along (img, w)
    o_ref : (1, H, LANES)              output rows
    act   : (H + 2*PADH, LANES)        zero-bordered activation scratch
    """
    # Zero ONLY the halo rows (the interior is fully overwritten every stage).
    # Done every grid step so it stays correct when the batch axis is split
    # across TensorCores.
    act[:PADH, :] = jnp.zeros((PADH, LANES), jnp.float32)
    act[PADH + H:, :] = jnp.zeros((PADH, LANES), jnp.float32)
    act[PADH:PADH + H, :] = x_ref[0]

    for s, dil in enumerate(DILATIONS):
        # Lane-concat the three kh-shifted row views -> single K = 3*LANES dot.
        lhs = jnp.concatenate(
            [act[PADH + (kh - 1) * dil:PADH + (kh - 1) * dil + H, :]
             for kh in range(3)],
            axis=-1)                                           # (H, 3*LANES)
        y = jnp.dot(lhs, w3_ref[s], preferred_element_type=jnp.float32)
        act[PADH:PADH + H, :] = jnp.maximum(y + b3_ref[s], 0.0)

    h = act[PADH:PADH + H, :]                                  # (H, LANES)
    y = jnp.dot(h, w1_ref[...], preferred_element_type=jnp.float32)
    o_ref[0] = x_ref[0] + y + b1_ref[...]                      # bias + residual


# ------------------------------ JAX wrappers ---------------------------------

def _mdcl_pallas(x_pairs, packed):
    NP, H, LANES = x_pairs.shape
    kern = functools.partial(_mdcl_fused_kernel, H=H, LANES=LANES)
    return pl.pallas_call(
        kern,
        out_shape=jax.ShapeDtypeStruct((NP, H, LANES), jnp.float32),
        grid=(NP,),
        in_specs=[
            pl.BlockSpec((1, H, LANES), lambda p: (p, 0, 0)),
            # Constant index_maps -> weights/biases stay VMEM-resident.
            pl.BlockSpec(packed["w3"].shape, lambda p: (0, 0, 0)),
            pl.BlockSpec(packed["b3"].shape, lambda p: (0, 0, 0)),
            pl.BlockSpec(packed["w1"].shape, lambda p: (0, 0)),
            pl.BlockSpec(packed["b1"].shape, lambda p: (0, 0)),
        ],
        out_specs=pl.BlockSpec((1, H, LANES), lambda p: (p, 0, 0)),
        scratch_shapes=[
            pltpu.VMEM((H + 2 * PADH, LANES), jnp.float32),
        ],
        compiler_params=pltpu.CompilerParams(
            dimension_semantics=("parallel",),   # split image-pairs over TCs
            vmem_limit_bytes=32 * 1024 * 1024,
        ),
    )(x_pairs, packed["w3"], packed["b3"], packed["w1"], packed["b1"])


@jax.jit
def mdcl_forward(x_nchw, packed):
    """Forward pass of mDCl.  Input/output are NCHW (PyTorch convention)."""
    B, C, H, W = x_nchw.shape
    Bp = B + (B % 2)                              # pad batch to even for pairs
    if Bp != B:
        x_nchw = jnp.pad(x_nchw, ((0, 1), (0, 0), (0, 0), (0, 0)))
    NP = Bp // 2
    # NCHW -> (NP, H, 2*W*C) with lane order (img-in-pair, w, c): one fused
    # reshape/transpose/reshape each way.
    x_pairs = jnp.transpose(
        x_nchw.reshape(NP, 2, C, H, W).astype(jnp.float32),
        (0, 3, 1, 4, 2)).reshape(NP, H, 2 * W * C)
    out_pairs = _mdcl_pallas(x_pairs, packed)
    out = jnp.transpose(
        out_pairs.reshape(NP, H, 2, W, C),
        (0, 2, 4, 1, 3)).reshape(Bp, C, H, W)
    return out[:B]


# --------------------- host-side parameter preparation -----------------------

def init_params(key, in_ch):
    """Deterministic synthetic parameters (shapes match the PyTorch module)."""
    keys = jax.random.split(key, 2 * len(DILATIONS) + 2)
    conv3 = []
    for i in range(len(DILATIONS)):
        w = 0.1 * jax.random.normal(keys[2 * i], (3, 3, in_ch, in_ch), jnp.float32)
        b = 0.1 * jax.random.normal(keys[2 * i + 1], (in_ch,), jnp.float32)
        conv3.append((w, b))
    w1 = 0.1 * jax.random.normal(keys[-2], (in_ch, in_ch), jnp.float32)
    b1 = 0.1 * jax.random.normal(keys[-1], (in_ch,), jnp.float32)
    return {"conv3x3": conv3, "conv1x1": (w1, b1)}


def pack_params(params, W, C):
    """Fold conv weights into the kh-fused, image-pair-packed matmul form.

    Lane layout: lane = img*W*C + w*C + c (two images per 128-lane row).
    For each stage s, the (3*LANES, LANES) matrix stacks the three kh taps
    along K; within each kh block a (W*C, W*C) matrix expresses the kw shift +
    Cin->Cout mixing (out-of-range kw taps are omitted = zero padding in W),
    duplicated block-diagonally for the two images in the pair.  The 1x1 conv
    is block-diagonal over (img, w).
    """
    WC = W * C
    LANES = 2 * WC
    n = len(DILATIONS)
    w3 = np.zeros((n, 3 * LANES, LANES), np.float32)
    b3 = np.zeros((n, 1, LANES), np.float32)
    for s, ((w, b), dil) in enumerate(zip(params["conv3x3"], DILATIONS)):
        w = np.asarray(w)                         # (3, 3, Cin, Cout)
        A = np.zeros((3, WC, WC), np.float32)     # per-image, per-kh fold
        for kh in range(3):
            for kw in range(3):
                for j in range(W):
                    p = j + (kw - 1) * dil
                    if 0 <= p < W:
                        A[kh, p * C:(p + 1) * C, j * C:(j + 1) * C] += w[kh, kw]
        for kh in range(3):
            for img in range(2):
                r0 = kh * LANES + img * WC
                c0 = img * WC
                w3[s, r0:r0 + WC, c0:c0 + WC] = A[kh]
        b3[s, 0, :] = np.tile(np.asarray(b), 2 * W)
    w1_raw, b1_raw = params["conv1x1"]
    w1 = np.zeros((LANES, LANES), np.float32)
    for img in range(2):
        for j in range(W):
            o = img * WC + j * C
            w1[o:o + C, o:o + C] = np.asarray(w1_raw)
    b1 = np.tile(np.asarray(b1_raw), 2 * W)[None, :].astype(np.float32)
    return {"w3": jnp.asarray(w3), "b3": jnp.asarray(b3),
            "w1": jnp.asarray(w1), "b1": jnp.asarray(b1)}


# ----------------------------- pure-JAX reference ----------------------------

def mdcl_reference(x_nchw, params):
    x = jnp.transpose(x_nchw, (0, 2, 3, 1)).astype(jnp.float32)
    h = x
    for (w, b), d in zip(params["conv3x3"], DILATIONS):
        h = lax.conv_general_dilated(
            h, w, window_strides=(1, 1), padding=[(d, d), (d, d)],
            rhs_dilation=(d, d), dimension_numbers=("NHWC", "HWIO", "NHWC"))
        h = jnp.maximum(h + b.reshape(1, 1, 1, -1), 0.0)
    w1, b1 = params["conv1x1"]
    y = jnp.einsum("bhwc,cd->bhwd", h, w1) + b1.reshape(1, 1, 1, -1)
    return jnp.transpose(x + y, (0, 3, 1, 2))


# ----------------------------------- main -------------------------------------

if __name__ == "__main__":
    B, C, H, W = 2, 4, 16, 16
    key = jax.random.PRNGKey(0)
    kx, kp = jax.random.split(key)
    x = jax.random.normal(kx, (B, C, H, W), jnp.float32)
    params = init_params(kp, C)
    packed = pack_params(params, W, C)

    out = jax.block_until_ready(mdcl_forward(x, packed))

    ref = mdcl_reference(x, params)
    assert out.shape == (B, C, H, W)
    assert jnp.allclose(out, ref, rtol=1e-4, atol=1e-4), (
        float(jnp.max(jnp.abs(out - ref))))

    print("KERNEL_OK")
</pallas_src>

<mosaic_0001>
module attributes {stable_mosaic.version = 11 : i64} {
  func.func @_mdcl_fused_kernel(%arg0: i32, %arg1: memref<1x16x128xf32, #tpu.memory_space<vmem>>, %arg2: memref<7x384x128xf32, #tpu.memory_space<vmem>>, %arg3: memref<7x1x128xf32, #tpu.memory_space<vmem>>, %arg4: memref<128x128xf32, #tpu.memory_space<vmem>>, %arg5: memref<1x128xf32, #tpu.memory_space<vmem>>, %arg6: memref<1x16x128xf32, #tpu.memory_space<vmem>>, %arg7: memref<32x128xf32, #tpu.memory_space<vmem>>) attributes {dimension_semantics = [#tpu.dimension_semantics<parallel>], iteration_bounds = array<i64: 1>, scalar_prefetch = 0 : i64, scratch_operands = 1 : i64, tpu.core_type = #tpu.core_type<tc>, window_params = [{transform_indices = @transform_0, window_bounds = array<i64: 1, 16, 128>}, {pipeline_mode = #tpu.pipeline_mode<synchronous>, transform_indices = @transform_1, window_bounds = array<i64: 7, 384, 128>}, {pipeline_mode = #tpu.pipeline_mode<synchronous>, transform_indices = @transform_2, window_bounds = array<i64: 7, 1, 128>}, {pipeline_mode = #tpu.pipeline_mode<synchronous>, transform_indices = @transform_3, window_bounds = array<i64: 128, 128>}, {pipeline_mode = #tpu.pipeline_mode<synchronous>, transform_indices = @transform_4, window_bounds = array<i64: 1, 128>}, {transform_indices = @transform_5, window_bounds = array<i64: 1, 16, 128>}]} {
    %cst = arith.constant 0.000000e+00 : f32
    %0 = vector.broadcast %cst : f32 to vector<8x128xf32>
    %c0 = arith.constant 0 : index
    %c0_0 = arith.constant 0 : index
    %1 = vector.load %arg7[%c0, %c0_0] : memref<32x128xf32, #tpu.memory_space<vmem>>, vector<8x128xf32>
    tpu.vector_store %arg7[%c0, %c0_0], %0 {strides = array<i32>} : memref<32x128xf32, #tpu.memory_space<vmem>>, vector<8x128xf32>,
    %cst_1 = arith.constant 0.000000e+00 : f32
    %2 = vector.broadcast %cst_1 : f32 to vector<8x128xf32>
    %c24 = arith.constant 24 : index
    %c0_2 = arith.constant 0 : index
    %3 = vector.load %arg7[%c24, %c0_2] : memref<32x128xf32, #tpu.memory_space<vmem>>, vector<8x128xf32>
    tpu.vector_store %arg7[%c24, %c0_2], %2 {strides = array<i32>} : memref<32x128xf32, #tpu.memory_space<vmem>>, vector<8x128xf32>,
    %c0_3 = arith.constant 0 : index
    %c0_4 = arith.constant 0 : index
    %c0_5 = arith.constant 0 : index
    %4 = vector.load %arg1[%c0_3, %c0_4, %c0_5] : memref<1x16x128xf32, #tpu.memory_space<vmem>>, vector<1x16x128xf32>
    %5 = vector.shape_cast %4 : vector<1x16x128xf32> to vector<16x128xf32>
    %c8 = arith.constant 8 : index
    %c0_6 = arith.constant 0 : index
    %6 = vector.load %arg7[%c8, %c0_6] : memref<32x128xf32, #tpu.memory_space<vmem>>, vector<16x128xf32>
    tpu.vector_store %arg7[%c8, %c0_6], %5 {strides = array<i32>} : memref<32x128xf32, #tpu.memory_space<vmem>>, vector<16x128xf32>,
    %c7 = arith.constant 7 : index
    %c0_7 = arith.constant 0 : index
    %7 = vector.load %arg7[%c7, %c0_7] : memref<32x128xf32, #tpu.memory_space<vmem>>, vector<16x128xf32>
    %c8_8 = arith.constant 8 : index
    %c0_9 = arith.constant 0 : index
    %8 = vector.load %arg7[%c8_8, %c0_9] : memref<32x128xf32, #tpu.memory_space<vmem>>, vector<16x128xf32>
    %c9 = arith.constant 9 : index
    %c0_10 = arith.constant 0 : index
    %9 = vector.load %arg7[%c9, %c0_10] : memref<32x128xf32, #tpu.memory_space<vmem>>, vector<16x128xf32>
    %10 = tpu.concatenate %7, %8, %9 in 1 : vector<16x128xf32>, vector<16x128xf32>, vector<16x128xf32> -> vector<16x384xf32>
    %c0_11 = arith.constant 0 : index
    %c0_12 = arith.constant 0 : index
    %c0_13 = arith.constant 0 : index
    %11 = vector.load %arg2[%c0_11, %c0_12, %c0_13] : memref<7x384x128xf32, #tpu.memory_space<vmem>>, vector<1x384x128xf32>
    %12 = vector.shape_cast %11 : vector<1x384x128xf32> to vector<384x128xf32>
    %cst_14 = arith.constant dense<0.000000e+00> : vector<16x128xf32>
    %13 = tpu.matmul %10, %12, %cst_14 {dimension_numbers = #tpu.dot_dimension_numbers<[1], [0], [0], [1], [0, 0, 1, 1], [], []>} : vector<16x384xf32>, vector<384x128xf32>, vector<16x128xf32> -> vector<16x128xf32>
    %c0_15 = arith.constant 0 : index
    %c0_16 = arith.constant 0 : index
    %c0_17 = arith.constant 0 : index
    %14 = vector.load %arg3[%c0_15, %c0_16, %c0_17] : memref<7x1x128xf32, #tpu.memory_space<vmem>>, vector<1x1x128xf32>
    %15 = vector.shape_cast %14 : vector<1x1x128xf32> to vector<1x128xf32>
    %16 = vector.broadcast %15 : vector<1x128xf32> to vector<16x128xf32>
    %17 = arith.addf %13, %16 : vector<16x128xf32>
    %cst_18 = arith.constant 0.000000e+00 : f32
    %18 = vector.broadcast %cst_18 : f32 to vector<16x128xf32>
    %19 = arith.maximumf %17, %18 : vector<16x128xf32>
    %c8_19 = arith.constant 8 : index
    %c0_20 = arith.constant 0 : index
    %20 = vector.load %arg7[%c8_19, %c0_20] : memref<32x128xf32, #tpu.memory_space<vmem>>, vector<16x128xf32>
    tpu.vector_store %arg7[%c8_19, %c0_20], %19 {strides = array<i32>} : memref<32x128xf32, #tpu.memory_space<vmem>>, vector<16x128xf32>,
    %c6 = arith.constant 6 : index
    %c0_21 = arith.constant 0 : index
    %21 = vector.load %arg7[%c6, %c0_21] : memref<32x128xf32, #tpu.memory_space<vmem>>, vector<16x128xf32>
    %c8_22 = arith.constant 8 : index
    %c0_23 = arith.constant 0 : index
    %22 = vector.load %arg7[%c8_22, %c0_23] : memref<32x128xf32, #tpu.memory_space<vmem>>, vector<16x128xf32>
    %c10 = arith.constant 10 : index
    %c0_24 = arith.constant 0 : index
    %23 = vector.load %arg7[%c10, %c0_24] : memref<32x128xf32, #tpu.memory_space<vmem>>, vector<16x128xf32>
    %24 = tpu.concatenate %21, %22, %23 in 1 : vector<16x128xf32>, vector<16x128xf32>, vector<16x128xf32> -> vector<16x384xf32>
    %c1 = arith.constant 1 : index
    %c0_25 = arith.constant 0 : index
    %c0_26 = arith.constant 0 : index
    %25 = vector.load %arg2[%c1, %c0_25, %c0_26] : memref<7x384x128xf32, #tpu.memory_space<vmem>>, vector<1x384x128xf32>
    %26 = vector.shape_cast %25 : vector<1x384x128xf32> to vector<384x128xf32>
    %cst_27 = arith.constant dense<0.000000e+00> : vector<16x128xf32>
    %27 = tpu.matmul %24, %26, %cst_27 {dimension_numbers = #tpu.dot_dimension_numbers<[1], [0], [0], [1], [0, 0, 1, 1], [], []>} : vector<16x384xf32>, vector<384x128xf32>, vector<16x128xf32> -> vector<16x128xf32>
    %c1_28 = arith.constant 1 : index
    %c0_29 = arith.constant 0 : index
    %c0_30 = arith.constant 0 : index
    %28 = vector.load %arg3[%c1_28, %c0_29, %c0_30] : memref<7x1x128xf32, #tpu.memory_space<vmem>>, vector<1x1x128xf32>
    %29 = vector.shape_cast %28 : vector<1x1x128xf32> to vector<1x128xf32>
    %30 = vector.broadcast %29 : vector<1x128xf32> to vector<16x128xf32>
    %31 = arith.addf %27, %30 : vector<16x128xf32>
    %cst_31 = arith.constant 0.000000e+00 : f32
    %32 = vector.broadcast %cst_31 : f32 to vector<16x128xf32>
    %33 = arith.maximumf %31, %32 : vector<16x128xf32>
    %c8_32 = arith.constant 8 : index
    %c0_33 = arith.constant 0 : index
    %34 = vector.load %arg7[%c8_32, %c0_33] : memref<32x128xf32, #tpu.memory_space<vmem>>, vector<16x128xf32>
    tpu.vector_store %arg7[%c8_32, %c0_33], %33 {strides = array<i32>} : memref<32x128xf32, #tpu.memory_space<vmem>>, vector<16x128xf32>,
    %c5 = arith.constant 5 : index
    %c0_34 = arith.constant 0 : index
    %35 = vector.load %arg7[%c5, %c0_34] : memref<32x128xf32, #tpu.memory_space<vmem>>, vector<16x128xf32>
    %c8_35 = arith.constant 8 : index
    %c0_36 = arith.constant 0 : index
    %36 = vector.load %arg7[%c8_35, %c0_36] : memref<32x128xf32, #tpu.memory_space<vmem>>, vector<16x128xf32>
    %c11 = arith.constant 11 : index
    %c0_37 = arith.constant 0 : index
    %37 = vector.load %arg7[%c11, %c0_37] : memref<32x128xf32, #tpu.memory_space<vmem>>, vector<16x128xf32>
    %38 = tpu.concatenate %35, %36, %37 in 1 : vector<16x128xf32>, vector<16x128xf32>, vector<16x128xf32> -> vector<16x384xf32>
    %c2 = arith.constant 2 : index
    %c0_38 = arith.constant 0 : index
    %c0_39 = arith.constant 0 : index
    %39 = vector.load %arg2[%c2, %c0_38, %c0_39] : memref<7x384x128xf32, #tpu.memory_space<vmem>>, vector<1x384x128xf32>
    %40 = vector.shape_cast %39 : vector<1x384x128xf32> to vector<384x128xf32>
    %cst_40 = arith.constant dense<0.000000e+00> : vector<16x128xf32>
    %41 = tpu.matmul %38, %40, %cst_40 {dimension_numbers = #tpu.dot_dimension_numbers<[1], [0], [0], [1], [0, 0, 1, 1], [], []>} : vector<16x384xf32>, vector<384x128xf32>, vector<16x128xf32> -> vector<16x128xf32>
    %c2_41 = arith.constant 2 : index
    %c0_42 = arith.constant 0 : index
    %c0_43 = arith.constant 0 : index
    %42 = vector.load %arg3[%c2_41, %c0_42, %c0_43] : memref<7x1x128xf32, #tpu.memory_space<vmem>>, vector<1x1x128xf32>
    %43 = vector.shape_cast %42 : vector<1x1x128xf32> to vector<1x128xf32>
    %44 = vector.broadcast %43 : vector<1x128xf32> to vector<16x128xf32>
    %45 = arith.addf %41, %44 : vector<16x128xf32>
    %cst_44 = arith.constant 0.000000e+00 : f32
    %46 = vector.broadcast %cst_44 : f32 to vector<16x128xf32>
    %47 = arith.maximumf %45, %46 : vector<16x128xf32>
    %c8_45 = arith.constant 8 : index
    %c0_46 = arith.constant 0 : index
    %48 = vector.load %arg7[%c8_45, %c0_46] : memref<32x128xf32, #tpu.memory_space<vmem>>, vector<16x128xf32>
    tpu.vector_store %arg7[%c8_45, %c0_46], %47 {strides = array<i32>} : memref<32x128xf32, #tpu.memory_space<vmem>>, vector<16x128xf32>,
    %c4 = arith.constant 4 : index
    %c0_47 = arith.constant 0 : index
    %49 = vector.load %arg7[%c4, %c0_47] : memref<32x128xf32, #tpu.memory_space<vmem>>, vector<16x128xf32>
    %c8_48 = arith.constant 8 : index
    %c0_49 = arith.constant 0 : index
    %50 = vector.load %arg7[%c8_48, %c0_49] : memref<32x128xf32, #tpu.memory_space<vmem>>, vector<16x128xf32>
    %c12 = arith.constant 12 : index
    %c0_50 = arith.constant 0 : index
    %51 = vector.load %arg7[%c12, %c0_50] : memref<32x128xf32, #tpu.memory_space<vmem>>, vector<16x128xf32>
    %52 = tpu.concatenate %49, %50, %51 in 1 : vector<16x128xf32>, vector<16x128xf32>, vector<16x128xf32> -> vector<16x384xf32>
    %c3 = arith.constant 3 : index
    %c0_51 = arith.constant 0 : index
    %c0_52 = arith.constant 0 : index
    %53 = vector.load %arg2[%c3, %c0_51, %c0_52] : memref<7x384x128xf32, #tpu.memory_space<vmem>>, vector<1x384x128xf32>
    %54 = vector.shape_cast %53 : vector<1x384x128xf32> to vector<384x128xf32>
    %cst_53 = arith.constant dense<0.000000e+00> : vector<16x128xf32>
    %55 = tpu.matmul %52, %54, %cst_53 {dimension_numbers = #tpu.dot_dimension_numbers<[1], [0], [0], [1], [0, 0, 1, 1], [], []>} : vector<16x384xf32>, vector<384x128xf32>, vector<16x128xf32> -> vector<16x128xf32>
    %c3_54 = arith.constant 3 : index
    %c0_55 = arith.constant 0 : index
    %c0_56 = arith.constant 0 : index
    %56 = vector.load %arg3[%c3_54, %c0_55, %c0_56] : memref<7x1x128xf32, #tpu.memory_space<vmem>>, vector<1x1x128xf32>
    %57 = vector.shape_cast %56 : vector<1x1x128xf32> to vector<1x128xf32>
    %58 = vector.broadcast %57 : vector<1x128xf32> to vector<16x128xf32>
    %59 = arith.addf %55, %58 : vector<16x128xf32>
    %cst_57 = arith.constant 0.000000e+00 : f32
    %60 = vector.broadcast %cst_57 : f32 to vector<16x128xf32>
    %61 = arith.maximumf %59, %60 : vector<16x128xf32>
    %c8_58 = arith.constant 8 : index
    %c0_59 = arith.constant 0 : index
    %62 = vector.load %arg7[%c8_58, %c0_59] : memref<32x128xf32, #tpu.memory_space<vmem>>, vector<16x128xf32>
    tpu.vector_store %arg7[%c8_58, %c0_59], %61 {strides = array<i32>} : memref<32x128xf32, #tpu.memory_space<vmem>>, vector<16x128xf32>,
    %c5_60 = arith.constant 5 : index
    %c0_61 = arith.constant 0 : index
    %63 = vector.load %arg7[%c5_60, %c0_61] : memref<32x128xf32, #tpu.memory_space<vmem>>, vector<16x128xf32>
    %c8_62 = arith.constant 8 : index
    %c0_63 = arith.constant 0 : index
    %64 = vector.load %arg7[%c8_62, %c0_63] : memref<32x128xf32, #tpu.memory_space<vmem>>, vector<16x128xf32>
    %c11_64 = arith.constant 11 : index
    %c0_65 = arith.constant 0 : index
    %65 = vector.load %arg7[%c11_64, %c0_65] : memref<32x128xf32, #tpu.memory_space<vmem>>, vector<16x128xf32>
    %66 = tpu.concatenate %63, %64, %65 in 1 : vector<16x128xf32>, vector<16x128xf32>, vector<16x128xf32> -> vector<16x384xf32>
    %c4_66 = arith.constant 4 : index
    %c0_67 = arith.constant 0 : index
    %c0_68 = arith.constant 0 : index
    %67 = vector.load %arg2[%c4_66, %c0_67, %c0_68] : memref<7x384x128xf32, #tpu.memory_space<vmem>>, vector<1x384x128xf32>
    %68 = vector.shape_cast %67 : vector<1x384x128xf32> to vector<384x128xf32>
    %cst_69 = arith.constant dense<0.000000e+00> : vector<16x128xf32>
    %69 = tpu.matmul %66, %68, %cst_69 {dimension_numbers = #tpu.dot_dimension_numbers<[1], [0], [0], [1], [0, 0, 1, 1], [], []>} : vector<16x384xf32>, vector<384x128xf32>, vector<16x128xf32> -> vector<16x128xf32>
    %c4_70 = arith.constant 4 : index
    %c0_71 = arith.constant 0 : index
    %c0_72 = arith.constant 0 : index
    %70 = vector.load %arg3[%c4_70, %c0_71, %c0_72] : memref<7x1x128xf32, #tpu.memory_space<vmem>>, vector<1x1x128xf32>
    %71 = vector.shape_cast %70 : vector<1x1x128xf32> to vector<1x128xf32>
    %72 = vector.broadcast %71 : vector<1x128xf32> to vector<16x128xf32>
    %73 = arith.addf %69, %72 : vector<16x128xf32>
    %cst_73 = arith.constant 0.000000e+00 : f32
    %74 = vector.broadcast %cst_73 : f32 to vector<16x128xf32>
    %75 = arith.maximumf %73, %74 : vector<16x128xf32>
    %c8_74 = arith.constant 8 : index
    %c0_75 = arith.constant 0 : index
    %76 = vector.load %arg7[%c8_74, %c0_75] : memref<32x128xf32, #tpu.memory_space<vmem>>, vector<16x128xf32>
    tpu.vector_store %arg7[%c8_74, %c0_75], %75 {strides = array<i32>} : memref<32x128xf32, #tpu.memory_space<vmem>>, vector<16x128xf32>,
    %c6_76 = arith.constant 6 : index
    %c0_77 = arith.constant 0 : index
    %77 = vector.load %arg7[%c6_76, %c0_77] : memref<32x128xf32, #tpu.memory_space<vmem>>, vector<16x128xf32>
    %c8_78 = arith.constant 8 : index
    %c0_79 = arith.constant 0 : index
    %78 = vector.load %arg7[%c8_78, %c0_79] : memref<32x128xf32, #tpu.memory_space<vmem>>, vector<16x128xf32>
    %c10_80 = arith.constant 10 : index
    %c0_81 = arith.constant 0 : index
    %79 = vector.load %arg7[%c10_80, %c0_81] : memref<32x128xf32, #tpu.memory_space<vmem>>, vector<16x128xf32>
    %80 = tpu.concatenate %77, %78, %79 in 1 : vector<16x128xf32>, vector<16x128xf32>, vector<16x128xf32> -> vector<16x384xf32>
    %c5_82 = arith.constant 5 : index
    %c0_83 = arith.constant 0 : index
    %c0_84 = arith.constant 0 : index
    %81 = vector.load %arg2[%c5_82, %c0_83, %c0_84] : memref<7x384x128xf32, #tpu.memory_space<vmem>>, vector<1x384x128xf32>
    %82 = vector.shape_cast %81 : vector<1x384x128xf32> to vector<384x128xf32>
    %cst_85 = arith.constant dense<0.000000e+00> : vector<16x128xf32>
    %83 = tpu.matmul %80, %82, %cst_85 {dimension_numbers = #tpu.dot_dimension_numbers<[1], [0], [0], [1], [0, 0, 1, 1], [], []>} : vector<16x384xf32>, vector<384x128xf32>, vector<16x128xf32> -> vector<16x128xf32>
    %c5_86 = arith.constant 5 : index
    %c0_87 = arith.constant 0 : index
    %c0_88 = arith.constant 0 : index
    %84 = vector.load %arg3[%c5_86, %c0_87, %c0_88] : memref<7x1x128xf32, #tpu.memory_space<vmem>>, vector<1x1x128xf32>
    %85 = vector.shape_cast %84 : vector<1x1x128xf32> to vector<1x128xf32>
    %86 = vector.broadcast %85 : vector<1x128xf32> to vector<16x128xf32>
    %87 = arith.addf %83, %86 : vector<16x128xf32>
    %cst_89 = arith.constant 0.000000e+00 : f32
    %88 = vector.broadcast %cst_89 : f32 to vector<16x128xf32>
    %89 = arith.maximumf %87, %88 : vector<16x128xf32>
    %c8_90 = arith.constant 8 : index
    %c0_91 = arith.constant 0 : index
    %90 = vector.load %arg7[%c8_90, %c0_91] : memref<32x128xf32, #tpu.memory_space<vmem>>, vector<16x128xf32>
    tpu.vector_store %arg7[%c8_90, %c0_91], %89 {strides = array<i32>} : memref<32x128xf32, #tpu.memory_space<vmem>>, vector<16x128xf32>,
    %c7_92 = arith.constant 7 : index
    %c0_93 = arith.constant 0 : index
    %91 = vector.load %arg7[%c7_92, %c0_93] : memref<32x128xf32, #tpu.memory_space<vmem>>, vector<16x128xf32>
    %c8_94 = arith.constant 8 : index
    %c0_95 = arith.constant 0 : index
    %92 = vector.load %arg7[%c8_94, %c0_95] : memref<32x128xf32, #tpu.memory_space<vmem>>, vector<16x128xf32>
    %c9_96 = arith.constant 9 : index
    %c0_97 = arith.constant 0 : index
    %93 = vector.load %arg7[%c9_96, %c0_97] : memref<32x128xf32, #tpu.memory_space<vmem>>, vector<16x128xf32>
    %94 = tpu.concatenate %91, %92, %93 in 1 : vector<16x128xf32>, vector<16x128xf32>, vector<16x128xf32> -> vector<16x384xf32>
    %c6_98 = arith.constant 6 : index
    %c0_99 = arith.constant 0 : index
    %c0_100 = arith.constant 0 : index
    %95 = vector.load %arg2[%c6_98, %c0_99, %c0_100] : memref<7x384x128xf32, #tpu.memory_space<vmem>>, vector<1x384x128xf32>
    %96 = vector.shape_cast %95 : vector<1x384x128xf32> to vector<384x128xf32>
    %cst_101 = arith.constant dense<0.000000e+00> : vector<16x128xf32>
    %97 = tpu.matmul %94, %96, %cst_101 {dimension_numbers = #tpu.dot_dimension_numbers<[1], [0], [0], [1], [0, 0, 1, 1], [], []>} : vector<16x384xf32>, vector<384x128xf32>, vector<16x128xf32> -> vector<16x128xf32>
    %c6_102 = arith.constant 6 : index
    %c0_103 = arith.constant 0 : index
    %c0_104 = arith.constant 0 : index
    %98 = vector.load %arg3[%c6_102, %c0_103, %c0_104] : memref<7x1x128xf32, #tpu.memory_space<vmem>>, vector<1x1x128xf32>
    %99 = vector.shape_cast %98 : vector<1x1x128xf32> to vector<1x128xf32>
    %100 = vector.broadcast %99 : vector<1x128xf32> to vector<16x128xf32>
    %101 = arith.addf %97, %100 : vector<16x128xf32>
    %cst_105 = arith.constant 0.000000e+00 : f32
    %102 = vector.broadcast %cst_105 : f32 to vector<16x128xf32>
    %103 = arith.maximumf %101, %102 : vector<16x128xf32>
    %c8_106 = arith.constant 8 : index
    %c0_107 = arith.constant 0 : index
    %104 = vector.load %arg7[%c8_106, %c0_107] : memref<32x128xf32, #tpu.memory_space<vmem>>, vector<16x128xf32>
    tpu.vector_store %arg7[%c8_106, %c0_107], %103 {strides = array<i32>} : memref<32x128xf32, #tpu.memory_space<vmem>>, vector<16x128xf32>,
    %c8_108 = arith.constant 8 : index
    %c0_109 = arith.constant 0 : index
    %105 = vector.load %arg7[%c8_108, %c0_109] : memref<32x128xf32, #tpu.memory_space<vmem>>, vector<16x128xf32>
    %c0_110 = arith.constant 0 : index
    %c0_111 = arith.constant 0 : index
    %106 = vector.load %arg4[%c0_110, %c0_111] : memref<128x128xf32, #tpu.memory_space<vmem>>, vector<128x128xf32>
    %cst_112 = arith.constant dense<0.000000e+00> : vector<16x128xf32>
    %107 = tpu.matmul %105, %106, %cst_112 {dimension_numbers = #tpu.dot_dimension_numbers<[1], [0], [0], [1], [0, 0, 1, 1], [], []>} : vector<16x128xf32>, vector<128x128xf32>, vector<16x128xf32> -> vector<16x128xf32>
    %c0_113 = arith.constant 0 : index
    %c0_114 = arith.constant 0 : index
    %c0_115 = arith.constant 0 : index
    %108 = vector.load %arg1[%c0_113, %c0_114, %c0_115] : memref<1x16x128xf32, #tpu.memory_space<vmem>>, vector<1x16x128xf32>
    %109 = vector.shape_cast %108 : vector<1x16x128xf32> to vector<16x128xf32>
    %110 = arith.addf %109, %107 : vector<16x128xf32>
    %c0_116 = arith.constant 0 : index
    %c0_117 = arith.constant 0 : index
    %111 = vector.load %arg5[%c0_116, %c0_117] : memref<1x128xf32, #tpu.memory_space<vmem>>, vector<1x128xf32>
    %112 = vector.broadcast %111 : vector<1x128xf32> to vector<16x128xf32>
    %113 = arith.addf %110, %112 : vector<16x128xf32>
    %c0_118 = arith.constant 0 : index
    %c0_119 = arith.constant 0 : index
    %c0_120 = arith.constant 0 : index
    %114 = vector.load %arg6[%c0_118, %c0_119, %c0_120] : memref<1x16x128xf32, #tpu.memory_space<vmem>>, vector<1x16x128xf32>
    %115 = vector.shape_cast %114 : vector<1x16x128xf32> to vector<16x128xf32>
    %116 = vector.shape_cast %113 : vector<16x128xf32> to vector<1x16x128xf32>
    tpu.vector_store %arg6[%c0_118, %c0_119, %c0_120], %116 {strides = array<i32>} : memref<1x16x128xf32, #tpu.memory_space<vmem>>, vector<1x16x128xf32>,
    return
  }
  func.func @transform_0(%arg0: i32) -> (i32, i32, i32) {
    %c0_i32 = arith.constant 0 : i32
    %c0_i32_0 = arith.constant 0 : i32
    %c0_i32_1 = arith.constant 0 : i32
    return %arg0, %c0_i32, %c0_i32_0 : i32, i32, i32
  }
  func.func @transform_1(%arg0: i32) -> (i32, i32, i32) {
    %c0_i32 = arith.constant 0 : i32
    %c0_i32_0 = arith.constant 0 : i32
    %c0_i32_1 = arith.constant 0 : i32
    %c0_i32_2 = arith.constant 0 : i32
    return %c0_i32, %c0_i32_0, %c0_i32_1 : i32, i32, i32
  }
  func.func @transform_2(%arg0: i32) -> (i32, i32, i32) {
    %c0_i32 = arith.constant 0 : i32
    %c0_i32_0 = arith.constant 0 : i32
    %c0_i32_1 = arith.constant 0 : i32
    %c0_i32_2 = arith.constant 0 : i32
    return %c0_i32, %c0_i32_0, %c0_i32_1 : i32, i32, i32
  }
  func.func @transform_3(%arg0: i32) -> (i32, i32) {
    %c0_i32 = arith.constant 0 : i32
    %c0_i32_0 = arith.constant 0 : i32
    %c0_i32_1 = arith.constant 0 : i32
    return %c0_i32, %c0_i32_0 : i32, i32
  }
  func.func @transform_4(%arg0: i32) -> (i32, i32) {
    %c0_i32 = arith.constant 0 : i32
    %c0_i32_0 = arith.constant 0 : i32
    %c0_i32_1 = arith.constant 0 : i32
    return %c0_i32, %c0_i32_0 : i32, i32
  }
  func.func @transform_5(%arg0: i32) -> (i32, i32, i32) {
    %c0_i32 = arith.constant 0 : i32
    %c0_i32_0 = arith.constant 0 : i32
    %c0_i32_1 = arith.constant 0 : i32
    return %arg0, %c0_i32, %c0_i32_0 : i32, i32, i32
  }
}

</mosaic_0001>

<llo_original>
// kernel: mdcl_forward.1
$region0: #{mdcl_forward.1}
  #allocation0 [shape = 'u32[]', space=smem, size = 0x4, offset = 0x4, fixed_abs, tag = 'smem constant byte address 0x4 - core index']
  #allocation1 [shape = 'u32[144,128]{1,0:T(1,128)}', space=vmem, size = 0x12000, scoped, tag = 'internal scratch']
  #allocation2 [shape = 'f32[32,128]{1,0:T(8,128)}', space=vmem, size = 0x4000, scoped, tag = 'scratch operand']
  %s0 = inlined_call_operand.vmem [shape: f32[1,16,128], index: 0, kind: input, shape index: {}]
  %s1 = inlined_call_operand.hbm [shape: f32[7,384,128], index: 1, kind: input, shape index: {}]
  %s2 = inlined_call_operand.hbm [shape: f32[7,1,128], index: 2, kind: input, shape index: {}]
  %s3 = inlined_call_operand.hbm [shape: f32[128,128], index: 3, kind: input, shape index: {}]
  %s4 = inlined_call_operand.hbm [shape: f32[1,128], index: 4, kind: input, shape index: {}]
  %s5 = inlined_call_operand.vmem [shape: f32[1,16,128], index: 5, kind: output, shape index: {}]
  %s6 = sld [smem:[#allocation0]]
  $region46: #{mdcl_forward.1} parent=0
    _
  %s8 = ssub.s32 1, %s6
  %s9 = scalar_select 0, %s8, %s6
  $region1: #{mdcl_forward.1} parent=0
    #allocation3 [shape = 'u8[1376256]{0}', space=vmem, size = 0x150000, scoped, tag = 'input window, operand 1, single buffered']
    #allocation4 [shape = 's32[1]{0}', space=sflag, size = 0x4, scoped, tag = 'scoped memory for mdcl_forward.1']
    #allocation5 [shape = 'u8[3584]{0}', space=vmem, size = 0x1000, scoped, tag = 'input window, operand 2, single buffered']
    #allocation6 [shape = 's32[1]{0}', space=sflag, size = 0x4, scoped, tag = 'scoped memory for mdcl_forward.1']
    #allocation7 [shape = 'u8[65536]{0}', space=vmem, size = 0x10000, scoped, tag = 'input window, operand 3, single buffered']
    #allocation8 [shape = 'u8[512]{0}', space=vmem, size = 0x400, scoped, tag = 'input window, operand 4, single buffered']
    #allocation9 [shape = 's32[1]{0}', space=sflag, size = 0x4, scoped, tag = 'scoped memory for mdcl_forward.1']
    %10 = vsyncpa [#allocation4], 0
    %11 = vsyncpa [#allocation6], 0
    %12 = vsyncpa [#allocation9], 0
    // Predicated region
    $region2: #{mdcl_forward.1} parent=1 // pred_check
      _
    $region3: #{mdcl_forward.1} parent=1 // pred_check_branch
      %14 = sbr.rel (0) target = $region5
    $region4: #{mdcl_forward.1} parent=1 // pred_region
      _
    $region5: #{mdcl_forward.1} parent=1 // pred_fallthru
      _
    // Predicated region
    $region6: #{mdcl_forward.1} parent=1 // pred_check
      _
    $region7: #{mdcl_forward.1} parent=1 // pred_check_branch
      %16 = sbr.rel (0) target = $region9
    $region8: #{mdcl_forward.1} parent=1 // pred_region
      %s18 = ssub.s32 43008, 43008
      %19 = vsyncadd [#allocation4], %s18
      %s20 = sshll.u32 [#allocation3], 4
      %s21 = int_to_ptr.vmem [resolvable:$true] %s20
      %26 = dma.hbm_to_vmem [thread:$0]  %s1, 43008, %s21, [#allocation4], 128, 128, 8
    $region9: #{mdcl_forward.1} parent=1 // pred_fallthru
      _
    // Predicated region
    $region10: #{mdcl_forward.1} parent=1 // pred_check
      _
    $region11: #{mdcl_forward.1} parent=1 // pred_check_branch
      %28 = sbr.rel (0) target = $region13
    $region12: #{mdcl_forward.1} parent=1 // pred_region
      %s30 = ssub.s32 112, 112
      %31 = vsyncadd [#allocation6], %s30
      %s32 = sshll.u32 [#allocation5], 4
      %s33 = int_to_ptr.vmem [resolvable:$true] %s32
      %38 = dma.hbm_to_vmem [thread:$0]  %s2, 112, %s33, [#allocation6], 16, 16, 1
    $region13: #{mdcl_forward.1} parent=1 // pred_fallthru
      _
    // Predicated region
    $region14: #{mdcl_forward.1} parent=1 // pred_check
      _
    $region15: #{mdcl_forward.1} parent=1 // pred_check_branch
      %40 = sbr.rel (0) target = $region17
    $region16: #{mdcl_forward.1} parent=1 // pred_region
      %s42 = ssub.s32 2048, 2048
      %43 = vsyncadd [#allocation6], %s42
      %s44 = sshll.u32 [#allocation7], 4
      %s45 = int_to_ptr.vmem [resolvable:$true] %s44
      %50 = dma.hbm_to_vmem [thread:$0]  %s3, 2048, %s45, [#allocation6], 128, 128, 8
    $region17: #{mdcl_forward.1} parent=1 // pred_fallthru
      _
    // Predicated region
    $region18: #{mdcl_forward.1} parent=1 // pred_check
      _
    $region19: #{mdcl_forward.1} parent=1 // pred_check_branch
      %52 = sbr.rel (0) target = $region21
    $region20: #{mdcl_forward.1} parent=1 // pred_region
      %s54 = ssub.s32 16, 16
      %55 = vsyncadd [#allocation9], %s54
      %s57 = sshll.u32 [#allocation8], 4
      %s58 = int_to_ptr.vmem [resolvable:$true] %s57
      %60 = dma.hbm_to_vmem [thread:$0]  %s4, 16, %s58, [#allocation9]
    $region21: #{mdcl_forward.1} parent=1 // pred_fallthru
      _
    // Predicated region
    $region22: #{mdcl_forward.1} parent=1 // pred_check
      _
    $region23: #{mdcl_forward.1} parent=1 // pred_check_branch
      %62 = sbr.rel (0) target = $region25
    $region24: #{mdcl_forward.1} parent=1 // pred_region
      %63 = dma.done [#allocation4], 43008
    $region25: #{mdcl_forward.1} parent=1 // pred_fallthru
      _
    // Predicated region
    $region26: #{mdcl_forward.1} parent=1 // pred_check
      _
    $region27: #{mdcl_forward.1} parent=1 // pred_check_branch
      %65 = sbr.rel (0) target = $region29
    $region28: #{mdcl_forward.1} parent=1 // pred_region
      %66 = dma.done [#allocation6], 112
    $region29: #{mdcl_forward.1} parent=1 // pred_fallthru
      _
    // Predicated region
    $region30: #{mdcl_forward.1} parent=1 // pred_check
      _
    $region31: #{mdcl_forward.1} parent=1 // pred_check_branch
      %68 = sbr.rel (0) target = $region33
    $region32: #{mdcl_forward.1} parent=1 // pred_region
      %69 = dma.done [#allocation6], 2048
    $region33: #{mdcl_forward.1} parent=1 // pred_fallthru
      _
    // Predicated region
    $region34: #{mdcl_forward.1} parent=1 // pred_check
      _
    $region35: #{mdcl_forward.1} parent=1 // pred_check_branch
      %71 = sbr.rel (0) target = $region37
    $region36: #{mdcl_forward.1} parent=1 // pred_region
      %72 = dma.done [#allocation9], 16
    $region37: #{mdcl_forward.1} parent=1 // pred_fallthru
      _
    %73 = vst [vmem:[#allocation2] sm:$0xff] 0.0
    %74 = vst [vmem:[#allocation2 + $0x18] sm:$0xff] 0.0
    %v75 = vld [vmem:[%s0] sm:$0xff]
    %v76 = vld [vmem:[%s0 + $0x8] sm:$0xff]
    %77 = vst [vmem:[#allocation2 + $0x8] sm:$0xff] %v75
    %78 = vst [vmem:[#allocation2 + $0x10] sm:$0xff] %v76
    %v79 = vld [vmem:[#allocation2 + $0x7] sm:$0xff]
    %v80 = vld [vmem:[#allocation2 + $0xf] sm:$0xff]
    %v81 = vld [vmem:[#allocation2 + $0x8] sm:$0xff]
    %v82 = vld [vmem:[#allocation2 + $0x10] sm:$0xff]
    %v83 = vld [vmem:[#allocation2 + $0x9] sm:$0xff]
    %v84 = vld [vmem:[#allocation2 + $0x11] sm:$0xff]
    %v85 = vld [vmem:[#allocation3] sm:$0xff]
    %v86 = vld [vmem:[#allocation3 + $0x8] sm:$0xff]
    %v87 = vld [vmem:[#allocation3 + $0x10] sm:$0xff]
    %v88 = vld [vmem:[#allocation3 + $0x18] sm:$0xff]
    %v89 = vld [vmem:[#allocation3 + $0x20] sm:$0xff]
    %v90 = vld [vmem:[#allocation3 + $0x28] sm:$0xff]
    %v91 = vld [vmem:[#allocation3 + $0x30] sm:$0xff]
    %v92 = vld [vmem:[#allocation3 + $0x38] sm:$0xff]
    %v93 = vld [vmem:[#allocation3 + $0x40] sm:$0xff]
    %v94 = vld [vmem:[#allocation3 + $0x48] sm:$0xff]
    %v95 = vld [vmem:[#allocation3 + $0x50] sm:$0xff]
    %v96 = vld [vmem:[#allocation3 + $0x58] sm:$0xff]
    %v97 = vld [vmem:[#allocation3 + $0x60] sm:$0xff]
    %v98 = vld [vmem:[#allocation3 + $0x68] sm:$0xff]
    %v99 = vld [vmem:[#allocation3 + $0x70] sm:$0xff]
    %v100 = vld [vmem:[#allocation3 + $0x78] sm:$0xff]
    %v101 = vld [vmem:[#allocation3 + $0x80] sm:$0xff]
    %v102 = vld [vmem:[#allocation3 + $0x88] sm:$0xff]
    %v103 = vld [vmem:[#allocation3 + $0x90] sm:$0xff]
    %v104 = vld [vmem:[#allocation3 + $0x98] sm:$0xff]
    %v105 = vld [vmem:[#allocation3 + $0xa0] sm:$0xff]
    %v106 = vld [vmem:[#allocation3 + $0xa8] sm:$0xff]
    %v107 = vld [vmem:[#allocation3 + $0xb0] sm:$0xff]
    %v108 = vld [vmem:[#allocation3 + $0xb8] sm:$0xff]
    %v109 = vld [vmem:[#allocation3 + $0xc0] sm:$0xff]
    %v110 = vld [vmem:[#allocation3 + $0xc8] sm:$0xff]
    %v111 = vld [vmem:[#allocation3 + $0xd0] sm:$0xff]
    %v112 = vld [vmem:[#allocation3 + $0xd8] sm:$0xff]
    %v113 = vld [vmem:[#allocation3 + $0xe0] sm:$0xff]
    %v114 = vld [vmem:[#allocation3 + $0xe8] sm:$0xff]
    %v115 = vld [vmem:[#allocation3 + $0xf0] sm:$0xff]
    %v116 = vld [vmem:[#allocation3 + $0xf8] sm:$0xff]
    %v117 = vld [vmem:[#allocation3 + $0x100] sm:$0xff]
    %v118 = vld [vmem:[#allocation3 + $0x108] sm:$0xff]
    %v119 = vld [vmem:[#allocation3 + $0x110] sm:$0xff]
    %v120 = vld [vmem:[#allocation3 + $0x118] sm:$0xff]
    %v121 = vld [vmem:[#allocation3 + $0x120] sm:$0xff]
    %v122 = vld [vmem:[#allocation3 + $0x128] sm:$0xff]
    %v123 = vld [vmem:[#allocation3 + $0x130] sm:$0xff]
    %v124 = vld [vmem:[#allocation3 + $0x138] sm:$0xff]
    %v125 = vld [vmem:[#allocation3 + $0x140] sm:$0xff]
    %v126 = vld [vmem:[#allocation3 + $0x148] sm:$0xff]
    %v127 = vld [vmem:[#allocation3 + $0x150] sm:$0xff]
    %v128 = vld [vmem:[#allocation3 + $0x158] sm:$0xff]
    %v129 = vld [vmem:[#allocation3 + $0x160] sm:$0xff]
    %v130 = vld [vmem:[#allocation3 + $0x168] sm:$0xff]
    %v131 = vld [vmem:[#allocation3 + $0x170] sm:$0xff]
    %v132 = vld [vmem:[#allocation3 + $0x178] sm:$0xff]
    %v133 = vld [vmem:[#allocation5] sm:$0x1]
    %v135 = vlaneseq
    %v136 = vshrl.u32 %v135, 7
    %v137 = vsub.s32 0, %v136
    %v138 = vrot.slane %v133, %v137
    %140 = vmatprep.subr.mxu0 0.0
    %141 = vmatpush1.msra.mxu0 %v85
    %142 = vmatprep.subr.mxu0 0.0
    %143 = vmatpush1.msra.mxu0 %v86
    %144 = vmatprep.subr.mxu0 0.0
    %145 = vmatpush1.msra.mxu0 %v87
    %146 = vmatprep.subr.mxu0 0.0
    %147 = vmatpush1.msra.mxu0 %v88
    %148 = vmatprep.subr.mxu0 0.0
    %149 = vmatpush1.msra.mxu0 %v89
    %150 = vmatprep.subr.mxu0 0.0
    %151 = vmatpush1.msra.mxu0 %v90
    %152 = vmatprep.subr.mxu0 0.0
    %153 = vmatpush1.msra.mxu0 %v91
    %154 = vmatprep.subr.mxu0 0.0
    %155 = vmatpush1.msra.mxu0 %v92
    %156 = vmatprep.subr.mxu0 0.0
    %157 = vmatpush1.msra.mxu0 %v93
    %158 = vmatprep.subr.mxu0 0.0
    %159 = vmatpush1.msra.mxu0 %v94
    %160 = vmatprep.subr.mxu0 0.0
    %161 = vmatpush1.msra.mxu0 %v95
    %162 = vmatprep.subr.mxu0 0.0
    %163 = vmatpush1.msra.mxu0 %v96
    %164 = vmatprep.subr.mxu0 0.0
    %165 = vmatpush1.msra.mxu0 %v97
    %166 = vmatprep.subr.mxu0 0.0
    %167 = vmatpush1.msra.mxu0 %v98
    %168 = vmatprep.subr.mxu0 0.0
    %169 = vmatpush1.msra.mxu0 %v99
    %170 = vmatprep.subr.mxu0 0.0
    %171 = vmatpush1.msra.mxu0 %v100
    %172 = vmatprep.subr.mxu0 0.0
    %173 = vmatpush1.msra.mxu0 %v101
    %174 = vmatprep.subr.mxu0 0.0
    %175 = vmatpush1.msra.mxu0 %v102
    %176 = vmatprep.subr.mxu0 0.0
    %177 = vmatpush1.msra.mxu0 %v103
    %178 = vmatprep.subr.mxu0 0.0
    %179 = vmatpush1.msra.mxu0 %v104
    %180 = vmatprep.subr.mxu0 0.0
    %181 = vmatpush1.msra.mxu0 %v105
    %182 = vmatprep.subr.mxu0 0.0
    %183 = vmatpush1.msra.mxu0 %v106
    %184 = vmatprep.subr.mxu0 0.0
    %185 = vmatpush1.msra.mxu0 %v107
    %186 = vmatprep.subr.mxu0 0.0
    %187 = vmatpush1.msra.mxu0 %v108
    %188 = vmatprep.subr.mxu0 0.0
    %189 = vmatpush1.msra.mxu0 %v109
    %190 = vmatprep.subr.mxu0 0.0
    %191 = vmatpush1.msra.mxu0 %v110
    %192 = vmatprep.subr.mxu0 0.0
    %193 = vmatpush1.msra.mxu0 %v111
    %194 = vmatprep.subr.mxu0 0.0
    %195 = vmatpush1.msra.mxu0 %v112
    %196 = vmatprep.subr.mxu0 0.0
    %197 = vmatpush1.msra.mxu0 %v113
    %198 = vmatprep.subr.mxu0 0.0
    %199 = vmatpush1.msra.mxu0 %v114
    %200 = vmatprep.subr.mxu0 0.0
    %201 = vmatpush1.msra.mxu0 %v115
    %202 = vmatprep.subr.mxu0 0.0
    %203 = vmatpush1.msra.mxu0 %v116
    %204 = vmatprep.mubr.f32.mxu0 %v81
    %205 = vmatmul.mubr.f32.gmra.mrb[0].mxu0 %v79
    %v206 = vpop.f32.mrb[0].mxu0
    %v207 = vadd.f32 %v138, %v206
    %v208 = vpop.f32.mrb[0].mxu0
    %209 = vmatprep.mubr.f32.mxu0 %v82
    %210 = vmatmul.mubr.f32.gmra.mrb[0].mxu0 %v80
    %v211 = vpop.f32.mrb[0].mxu0
    %v212 = vadd.f32 %v138, %v211
    %v213 = vpop.f32.mrb[0].mxu0
    %214 = vdwg.mxu0
    %215 = vmatprep.subr.mxu0 0.0
    %216 = vmatpush1.msra.mxu0 %v117
    %217 = vmatprep.subr.mxu0 0.0
    %218 = vmatpush1.msra.mxu0 %v118
    %219 = vmatprep.subr.mxu0 0.0
    %220 = vmatpush1.msra.mxu0 %v119
    %221 = vmatprep.subr.mxu0 0.0
    %222 = vmatpush1.msra.mxu0 %v120
    %223 = vmatprep.subr.mxu0 0.0
    %224 = vmatpush1.msra.mxu0 %v121
    %225 = vmatprep.subr.mxu0 0.0
    %226 = vmatpush1.msra.mxu0 %v122
    %227 = vmatprep.subr.mxu0 0.0
    %228 = vmatpush1.msra.mxu0 %v123
    %229 = vmatprep.subr.mxu0 0.0
    %230 = vmatpush1.msra.mxu0 %v124
    %231 = vmatprep.subr.mxu0 0.0
    %232 = vmatpush1.msra.mxu0 %v125
    %233 = vmatprep.subr.mxu0 0.0
    %234 = vmatpush1.msra.mxu0 %v126
    %235 = vmatprep.subr.mxu0 0.0
    %236 = vmatpush1.msra.mxu0 %v127
    %237 = vmatprep.subr.mxu0 0.0
    %238 = vmatpush1.msra.mxu0 %v128
    %239 = vmatprep.subr.mxu0 0.0
    %240 = vmatpush1.msra.mxu0 %v129
    %241 = vmatprep.subr.mxu0 0.0
    %242 = vmatpush1.msra.mxu0 %v130
    %243 = vmatprep.subr.mxu0 0.0
    %244 = vmatpush1.msra.mxu0 %v131
    %245 = vmatprep.subr.mxu0 0.0
    %246 = vmatpush1.msra.mxu0 %v132
    %247 = vmatprep.subr.mxu0 0.0
    %248 = vmatpush1.msra.mxu0 0.0
    %249 = vmatprep.subr.mxu0 0.0
    %250 = vmatpush1.msra.mxu0 0.0
    %251 = vmatprep.subr.mxu0 0.0
    %252 = vmatpush1.msra.mxu0 0.0
    %253 = vmatprep.subr.mxu0 0.0
    %254 = vmatpush1.msra.mxu0 0.0
    %255 = vmatprep.subr.mxu0 0.0
    %256 = vmatpush1.msra.mxu0 0.0
    %257 = vmatprep.subr.mxu0 0.0
    %258 = vmatpush1.msra.mxu0 0.0
    %259 = vmatprep.subr.mxu0 0.0
    %260 = vmatpush1.msra.mxu0 0.0
    %261 = vmatprep.subr.mxu0 0.0
    %262 = vmatpush1.msra.mxu0 0.0
    %263 = vmatprep.subr.mxu0 0.0
    %264 = vmatpush1.msra.mxu0 0.0
    %265 = vmatprep.subr.mxu0 0.0
    %266 = vmatpush1.msra.mxu0 0.0
    %267 = vmatprep.subr.mxu0 0.0
    %268 = vmatpush1.msra.mxu0 0.0
    %269 = vmatprep.subr.mxu0 0.0
    %270 = vmatpush1.msra.mxu0 0.0
    %271 = vmatprep.subr.mxu0 0.0
    %272 = vmatpush1.msra.mxu0 0.0
    %273 = vmatprep.subr.mxu0 0.0
    %274 = vmatpush1.msra.mxu0 0.0
    %275 = vmatprep.subr.mxu0 0.0
    %276 = vmatpush1.msra.mxu0 0.0
    %277 = vmatprep.subr.mxu0 0.0
    %278 = vmatpush1.msra.mxu0 0.0
    %279 = vmatprep.mubr.f32.mxu0 0.0
    %280 = vmatmul.mubr.f32.gmra.mrb[0].mxu0 %v83
    %v281 = vpop.f32.mrb[0].mxu0
    %v282 = vadd.f32 %v207, %v281
    %v283 = vpop.f32.mrb[0].mxu0
    %284 = vmatprep.mubr.f32.mxu0 0.0
    %285 = vmatmul.mubr.f32.gmra.mrb[0].mxu0 %v84
    %v286 = vpop.f32.mrb[0].mxu0
    %v287 = vadd.f32 %v212, %v286
    %v288 = vpop.f32.mrb[0].mxu0
    %289 = vdwg.mxu0
    %v290 = vmax.f32 %v282, 0.0
    %v291 = vmax.f32 %v287, 0.0
    %292 = vst [vmem:[#allocation2 + $0x8] sm:$0xff] %v290
    %293 = vst [vmem:[#allocation2 + $0x10] sm:$0xff] %v291
    %v294 = vld [vmem:[#allocation2 + $0x6] sm:$0xff]
    %v295 = vld [vmem:[#allocation2 + $0xe] sm:$0xff]
    %v296 = vld [vmem:[#allocation2 + $0x8] sm:$0xff]
    %v297 = vld [vmem:[#allocation2 + $0x10] sm:$0xff]
    %v298 = vld [vmem:[#allocation2 + $0xa] sm:$0xff]
    %v299 = vld [vmem:[#allocation2 + $0x12] sm:$0xff]
    %s300 = scalar_lea.vmem [#allocation3], 384
    %v301 = vld [vmem:[%s300] sm:$0xff]
    %v302 = vld [vmem:[%s300 + $0x8] sm:$0xff]
    %v303 = vld [vmem:[%s300 + $0x10] sm:$0xff]
    %v304 = vld [vmem:[%s300 + $0x18] sm:$0xff]
    %v305 = vld [vmem:[%s300 + $0x20] sm:$0xff]
    %v306 = vld [vmem:[%s300 + $0x28] sm:$0xff]
    %v307 = vld [vmem:[%s300 + $0x30] sm:$0xff]
    %v308 = vld [vmem:[%s300 + $0x38] sm:$0xff]
    %v309 = vld [vmem:[%s300 + $0x40] sm:$0xff]
    %v310 = vld [vmem:[%s300 + $0x48] sm:$0xff]
    %v311 = vld [vmem:[%s300 + $0x50] sm:$0xff]
    %v312 = vld [vmem:[%s300 + $0x58] sm:$0xff]
    %v313 = vld [vmem:[%s300 + $0x60] sm:$0xff]
    %v314 = vld [vmem:[%s300 + $0x68] sm:$0xff]
    %v315 = vld [vmem:[%s300 + $0x70] sm:$0xff]
    %v316 = vld [vmem:[%s300 + $0x78] sm:$0xff]
    %v317 = vld [vmem:[%s300 + $0x80] sm:$0xff]
    %v318 = vld [vmem:[%s300 + $0x88] sm:$0xff]
    %v319 = vld [vmem:[%s300 + $0x90] sm:$0xff]
    %v320 = vld [vmem:[%s300 + $0x98] sm:$0xff]
    %v321 = vld [vmem:[%s300 + $0xa0] sm:$0xff]
    %v322 = vld [vmem:[%s300 + $0xa8] sm:$0xff]
    %v323 = vld [vmem:[%s300 + $0xb0] sm:$0xff]
    %v324 = vld [vmem:[%s300 + $0xb8] sm:$0xff]
    %v325 = vld [vmem:[%s300 + $0xc0] sm:$0xff]
    %v326 = vld [vmem:[%s300 + $0xc8] sm:$0xff]
    %v327 = vld [vmem:[%s300 + $0xd0] sm:$0xff]
    %v328 = vld [vmem:[%s300 + $0xd8] sm:$0xff]
    %v329 = vld [vmem:[%s300 + $0xe0] sm:$0xff]
    %v330 = vld [vmem:[%s300 + $0xe8] sm:$0xff]
    %v331 = vld [vmem:[%s300 + $0xf0] sm:$0xff]
    %v332 = vld [vmem:[%s300 + $0xf8] sm:$0xff]
    %v333 = vld [vmem:[%s300 + $0x100] sm:$0xff]
    %v334 = vld [vmem:[%s300 + $0x108] sm:$0xff]
    %v335 = vld [vmem:[%s300 + $0x110] sm:$0xff]
    %v336 = vld [vmem:[%s300 + $0x118] sm:$0xff]
    %v337 = vld [vmem:[%s300 + $0x120] sm:$0xff]
    %v338 = vld [vmem:[%s300 + $0x128] sm:$0xff]
    %v339 = vld [vmem:[%s300 + $0x130] sm:$0xff]
    %v340 = vld [vmem:[%s300 + $0x138] sm:$0xff]
    %v341 = vld [vmem:[%s300 + $0x140] sm:$0xff]
    %v342 = vld [vmem:[%s300 + $0x148] sm:$0xff]
    %v343 = vld [vmem:[%s300 + $0x150] sm:$0xff]
    %v344 = vld [vmem:[%s300 + $0x158] sm:$0xff]
    %v345 = vld [vmem:[%s300 + $0x160] sm:$0xff]
    %v346 = vld [vmem:[%s300 + $0x168] sm:$0xff]
    %v347 = vld [vmem:[%s300 + $0x170] sm:$0xff]
    %v348 = vld [vmem:[%s300 + $0x178] sm:$0xff]
    %s349 = scalar_lea.vmem [#allocation5], 1
    %v350 = vld [vmem:[%s349] sm:$0x1]
    %v352 = vlaneseq
    %v353 = vshrl.u32 %v352, 7
    %v354 = vsub.s32 0, %v353
    %v355 = vrot.slane %v350, %v354
    %357 = vmatprep.subr.mxu0 0.0
    %358 = vmatpush1.msra.mxu0 %v301
    %359 = vmatprep.subr.mxu0 0.0
    %360 = vmatpush1.msra.mxu0 %v302
    %361 = vmatprep.subr.mxu0 0.0
    %362 = vmatpush1.msra.mxu0 %v303
    %363 = vmatprep.subr.mxu0 0.0
    %364 = vmatpush1.msra.mxu0 %v304
    %365 = vmatprep.subr.mxu0 0.0
    %366 = vmatpush1.msra.mxu0 %v305
    %367 = vmatprep.subr.mxu0 0.0
    %368 = vmatpush1.msra.mxu0 %v306
    %369 = vmatprep.subr.mxu0 0.0
    %370 = vmatpush1.msra.mxu0 %v307
    %371 = vmatprep.subr.mxu0 0.0
    %372 = vmatpush1.msra.mxu0 %v308
    %373 = vmatprep.subr.mxu0 0.0
    %374 = vmatpush1.msra.mxu0 %v309
    %375 = vmatprep.subr.mxu0 0.0
    %376 = vmatpush1.msra.mxu0 %v310
    %377 = vmatprep.subr.mxu0 0.0
    %378 = vmatpush1.msra.mxu0 %v311
    %379 = vmatprep.subr.mxu0 0.0
    %380 = vmatpush1.msra.mxu0 %v312
    %381 = vmatprep.subr.mxu0 0.0
    %382 = vmatpush1.msra.mxu0 %v313
    %383 = vmatprep.subr.mxu0 0.0
    %384 = vmatpush1.msra.mxu0 %v314
    %385 = vmatprep.subr.mxu0 0.0
    %386 = vmatpush1.msra.mxu0 %v315
    %387 = vmatprep.subr.mxu0 0.0
    %388 = vmatpush1.msra.mxu0 %v316
    %389 = vmatprep.subr.mxu0 0.0
    %390 = vmatpush1.msra.mxu0 %v317
    %391 = vmatprep.subr.mxu0 0.0
    %392 = vmatpush1.msra.mxu0 %v318
    %393 = vmatprep.subr.mxu0 0.0
    %394 = vmatpush1.msra.mxu0 %v319
    %395 = vmatprep.subr.mxu0 0.0
    %396 = vmatpush1.msra.mxu0 %v320
    %397 = vmatprep.subr.mxu0 0.0
    %398 = vmatpush1.msra.mxu0 %v321
    %399 = vmatprep.subr.mxu0 0.0
    %400 = vmatpush1.msra.mxu0 %v322
    %401 = vmatprep.subr.mxu0 0.0
    %402 = vmatpush1.msra.mxu0 %v323
    %403 = vmatprep.subr.mxu0 0.0
    %404 = vmatpush1.msra.mxu0 %v324
    %405 = vmatprep.subr.mxu0 0.0
    %406 = vmatpush1.msra.mxu0 %v325
    %407 = vmatprep.subr.mxu0 0.0
    %408 = vmatpush1.msra.mxu0 %v326
    %409 = vmatprep.subr.mxu0 0.0
    %410 = vmatpush1.msra.mxu0 %v327
    %411 = vmatprep.subr.mxu0 0.0
    %412 = vmatpush1.msra.mxu0 %v328
    %413 = vmatprep.subr.mxu0 0.0
    %414 = vmatpush1.msra.mxu0 %v329
    %415 = vmatprep.subr.mxu0 0.0
    %416 = vmatpush1.msra.mxu0 %v330
    %417 = vmatprep.subr.mxu0 0.0
    %418 = vmatpush1.msra.mxu0 %v331
    %419 = vmatprep.subr.mxu0 0.0
    %420 = vmatpush1.msra.mxu0 %v332
    %421 = vmatprep.mubr.f32.mxu0 %v296
    %422 = vmatmul.mubr.f32.gmra.mrb[0].mxu0 %v294
    %v423 = vpop.f32.mrb[0].mxu0
    %v424 = vadd.f32 %v355, %v423
    %v425 = vpop.f32.mrb[0].mxu0
    %426 = vmatprep.mubr.f32.mxu0 %v297
    %427 = vmatmul.mubr.f32.gmra.mrb[0].mxu0 %v295
    %v428 = vpop.f32.mrb[0].mxu0
    %v429 = vadd.f32 %v355, %v428
    %v430 = vpop.f32.mrb[0].mxu0
    %431 = vdwg.mxu0
    %432 = vmatprep.subr.mxu0 0.0
    %433 = vmatpush1.msra.mxu0 %v333
    %434 = vmatprep.subr.mxu0 0.0
    %435 = vmatpush1.msra.mxu0 %v334
    %436 = vmatprep.subr.mxu0 0.0
    %437 = vmatpush1.msra.mxu0 %v335
    %438 = vmatprep.subr.mxu0 0.0
    %439 = vmatpush1.msra.mxu0 %v336
    %440 = vmatprep.subr.mxu0 0.0
    %441 = vmatpush1.msra.mxu0 %v337
    %442 = vmatprep.subr.mxu0 0.0
    %443 = vmatpush1.msra.mxu0 %v338
    %444 = vmatprep.subr.mxu0 0.0
    %445 = vmatpush1.msra.mxu0 %v339
    %446 = vmatprep.subr.mxu0 0.0
    %447 = vmatpush1.msra.mxu0 %v340
    %448 = vmatprep.subr.mxu0 0.0
    %449 = vmatpush1.msra.mxu0 %v341
    %450 = vmatprep.subr.mxu0 0.0
    %451 = vmatpush1.msra.mxu0 %v342
    %452 = vmatprep.subr.mxu0 0.0
    %453 = vmatpush1.msra.mxu0 %v343
    %454 = vmatprep.subr.mxu0 0.0
    %455 = vmatpush1.msra.mxu0 %v344
    %456 = vmatprep.subr.mxu0 0.0
    %457 = vmatpush1.msra.mxu0 %v345
    %458 = vmatprep.subr.mxu0 0.0
    %459 = vmatpush1.msra.mxu0 %v346
    %460 = vmatprep.subr.mxu0 0.0
    %461 = vmatpush1.msra.mxu0 %v347
    %462 = vmatprep.subr.mxu0 0.0
    %463 = vmatpush1.msra.mxu0 %v348
    %464 = vmatprep.subr.mxu0 0.0
    %465 = vmatpush1.msra.mxu0 0.0
    %466 = vmatprep.subr.mxu0 0.0
    %467 = vmatpush1.msra.mxu0 0.0
    %468 = vmatprep.subr.mxu0 0.0
    %469 = vmatpush1.msra.mxu0 0.0
    %470 = vmatprep.subr.mxu0 0.0
    %471 = vmatpush1.msra.mxu0 0.0
    %472 = vmatprep.subr.mxu0 0.0
    %473 = vmatpush1.msra.mxu0 0.0
    %474 = vmatprep.subr.mxu0 0.0
    %475 = vmatpush1.msra.mxu0 0.0
    %476 = vmatprep.subr.mxu0 0.0
    %477 = vmatpush1.msra.mxu0 0.0
    %478 = vmatprep.subr.mxu0 0.0
    %479 = vmatpush1.msra.mxu0 0.0
    %480 = vmatprep.subr.mxu0 0.0
    %481 = vmatpush1.msra.mxu0 0.0
    %482 = vmatprep.subr.mxu0 0.0
    %483 = vmatpush1.msra.mxu0 0.0
    %484 = vmatprep.subr.mxu0 0.0
    %485 = vmatpush1.msra.mxu0 0.0
    %486 = vmatprep.subr.mxu0 0.0
    %487 = vmatpush1.msra.mxu0 0.0
    %488 = vmatprep.subr.mxu0 0.0
    %489 = vmatpush1.msra.mxu0 0.0
    %490 = vmatprep.subr.mxu0 0.0
    %491 = vmatpush1.msra.mxu0 0.0
    %492 = vmatprep.subr.mxu0 0.0
    %493 = vmatpush1.msra.mxu0 0.0
    %494 = vmatprep.subr.mxu0 0.0
    %495 = vmatpush1.msra.mxu0 0.0
    %496 = vmatprep.mubr.f32.mxu0 0.0
    %497 = vmatmul.mubr.f32.gmra.mrb[0].mxu0 %v298
    %v498 = vpop.f32.mrb[0].mxu0
    %v499 = vadd.f32 %v424, %v498
    %v500 = vpop.f32.mrb[0].mxu0
    %501 = vmatprep.mubr.f32.mxu0 0.0
    %502 = vmatmul.mubr.f32.gmra.mrb[0].mxu0 %v299
    %v503 = vpop.f32.mrb[0].mxu0
    %v504 = vadd.f32 %v429, %v503
    %v505 = vpop.f32.mrb[0].mxu0
    %506 = vdwg.mxu0
    %v507 = vmax.f32 %v499, 0.0
    %v508 = vmax.f32 %v504, 0.0
    %509 = vst [vmem:[#allocation2 + $0x8] sm:$0xff] %v507
    %510 = vst [vmem:[#allocation2 + $0x10] sm:$0xff] %v508
    %v511 = vld [vmem:[#allocation2 + $0x5] sm:$0xff]
    %v512 = vld [vmem:[#allocation2 + $0xd] sm:$0xff]
    %v513 = vld [vmem:[#allocation2 + $0x8] sm:$0xff]
    %v514 = vld [vmem:[#allocation2 + $0x10] sm:$0xff]
    %v515 = vld [vmem:[#allocation2 + $0xb] sm:$0xff]
    %v516 = vld [vmem:[#allocation2 + $0x13] sm:$0xff]
    %s517 = scalar_lea.vmem [#allocation3], 768
    %v518 = vld [vmem:[%s517] sm:$0xff]
    %v519 = vld [vmem:[%s517 + $0x8] sm:$0xff]
    %v520 = vld [vmem:[%s517 + $0x10] sm:$0xff]
    %v521 = vld [vmem:[%s517 + $0x18] sm:$0xff]
    %v522 = vld [vmem:[%s517 + $0x20] sm:$0xff]
    %v523 = vld [vmem:[%s517 + $0x28] sm:$0xff]
    %v524 = vld [vmem:[%s517 + $0x30] sm:$0xff]
    %v525 = vld [vmem:[%s517 + $0x38] sm:$0xff]
    %v526 = vld [vmem:[%s517 + $0x40] sm:$0xff]
    %v527 = vld [vmem:[%s517 + $0x48] sm:$0xff]
    %v528 = vld [vmem:[%s517 + $0x50] sm:$0xff]
    %v529 = vld [vmem:[%s517 + $0x58] sm:$0xff]
    %v530 = vld [vmem:[%s517 + $0x60] sm:$0xff]
    %v531 = vld [vmem:[%s517 + $0x68] sm:$0xff]
    %v532 = vld [vmem:[%s517 + $0x70] sm:$0xff]
    %v533 = vld [vmem:[%s517 + $0x78] sm:$0xff]
    %v534 = vld [vmem:[%s517 + $0x80] sm:$0xff]
    %v535 = vld [vmem:[%s517 + $0x88] sm:$0xff]
    %v536 = vld [vmem:[%s517 + $0x90] sm:$0xff]
    %v537 = vld [vmem:[%s517 + $0x98] sm:$0xff]
    %v538 = vld [vmem:[%s517 + $0xa0] sm:$0xff]
    %v539 = vld [vmem:[%s517 + $0xa8] sm:$0xff]
    %v540 = vld [vmem:[%s517 + $0xb0] sm:$0xff]
    %v541 = vld [vmem:[%s517 + $0xb8] sm:$0xff]
    %v542 = vld [vmem:[%s517 + $0xc0] sm:$0xff]
    %v543 = vld [vmem:[%s517 + $0xc8] sm:$0xff]
    %v544 = vld [vmem:[%s517 + $0xd0] sm:$0xff]
    %v545 = vld [vmem:[%s517 + $0xd8] sm:$0xff]
    %v546 = vld [vmem:[%s517 + $0xe0] sm:$0xff]
    %v547 = vld [vmem:[%s517 + $0xe8] sm:$0xff]
    %v548 = vld [vmem:[%s517 + $0xf0] sm:$0xff]
    %v549 = vld [vmem:[%s517 + $0xf8] sm:$0xff]
    %v550 = vld [vmem:[%s517 + $0x100] sm:$0xff]
    %v551 = vld [vmem:[%s517 + $0x108] sm:$0xff]
    %v552 = vld [vmem:[%s517 + $0x110] sm:$0xff]
    %v553 = vld [vmem:[%s517 + $0x118] sm:$0xff]
    %v554 = vld [vmem:[%s517 + $0x120] sm:$0xff]
    %v555 = vld [vmem:[%s517 + $0x128] sm:$0xff]
    %v556 = vld [vmem:[%s517 + $0x130] sm:$0xff]
    %v557 = vld [vmem:[%s517 + $0x138] sm:$0xff]
    %v558 = vld [vmem:[%s517 + $0x140] sm:$0xff]
    %v559 = vld [vmem:[%s517 + $0x148] sm:$0xff]
    %v560 = vld [vmem:[%s517 + $0x150] sm:$0xff]
    %v561 = vld [vmem:[%s517 + $0x158] sm:$0xff]
    %v562 = vld [vmem:[%s517 + $0x160] sm:$0xff]
    %v563 = vld [vmem:[%s517 + $0x168] sm:$0xff]
    %v564 = vld [vmem:[%s517 + $0x170] sm:$0xff]
    %v565 = vld [vmem:[%s517 + $0x178] sm:$0xff]
    %s566 = scalar_lea.vmem [#allocation5], 2
    %v567 = vld [vmem:[%s566] sm:$0x1]
    %v569 = vlaneseq
    %v570 = vshrl.u32 %v569, 7
    %v571 = vsub.s32 0, %v570
    %v572 = vrot.slane %v567, %v571
    %574 = vmatprep.subr.mxu0 0.0
    %575 = vmatpush1.msra.mxu0 %v518
    %576 = vmatprep.subr.mxu0 0.0
    %577 = vmatpush1.msra.mxu0 %v519
    %578 = vmatprep.subr.mxu0 0.0
    %579 = vmatpush1.msra.mxu0 %v520
    %580 = vmatprep.subr.mxu0 0.0
    %581 = vmatpush1.msra.mxu0 %v521
    %582 = vmatprep.subr.mxu0 0.0
    %583 = vmatpush1.msra.mxu0 %v522
    %584 = vmatprep.subr.mxu0 0.0
    %585 = vmatpush1.msra.mxu0 %v523
    %586 = vmatprep.subr.mxu0 0.0
    %587 = vmatpush1.msra.mxu0 %v524
    %588 = vmatprep.subr.mxu0 0.0
    %589 = vmatpush1.msra.mxu0 %v525
    %590 = vmatprep.subr.mxu0 0.0
    %591 = vmatpush1.msra.mxu0 %v526
    %592 = vmatprep.subr.mxu0 0.0
    %593 = vmatpush1.msra.mxu0 %v527
    %594 = vmatprep.subr.mxu0 0.0
    %595 = vmatpush1.msra.mxu0 %v528
    %596 = vmatprep.subr.mxu0 0.0
    %597 = vmatpush1.msra.mxu0 %v529
    %598 = vmatprep.subr.mxu0 0.0
    %599 = vmatpush1.msra.mxu0 %v530
    %600 = vmatprep.subr.mxu0 0.0
    %601 = vmatpush1.msra.mxu0 %v531
    %602 = vmatprep.subr.mxu0 0.0
    %603 = vmatpush1.msra.mxu0 %v532
    %604 = vmatprep.subr.mxu0 0.0
    %605 = vmatpush1.msra.mxu0 %v533
    %606 = vmatprep.subr.mxu0 0.0
    %607 = vmatpush1.msra.mxu0 %v534
    %608 = vmatprep.subr.mxu0 0.0
    %609 = vmatpush1.msra.mxu0 %v535
    %610 = vmatprep.subr.mxu0 0.0
    %611 = vmatpush1.msra.mxu0 %v536
    %612 = vmatprep.subr.mxu0 0.0
    %613 = vmatpush1.msra.mxu0 %v537
    %614 = vmatprep.subr.mxu0 0.0
    %615 = vmatpush1.msra.mxu0 %v538
    %616 = vmatprep.subr.mxu0 0.0
    %617 = vmatpush1.msra.mxu0 %v539
    %618 = vmatprep.subr.mxu0 0.0
    %619 = vmatpush1.msra.mxu0 %v540
    %620 = vmatprep.subr.mxu0 0.0
    %621 = vmatpush1.msra.mxu0 %v541
    %622 = vmatprep.subr.mxu0 0.0
    %623 = vmatpush1.msra.mxu0 %v542
    %624 = vmatprep.subr.mxu0 0.0
    %625 = vmatpush1.msra.mxu0 %v543
    %626 = vmatprep.subr.mxu0 0.0
    %627 = vmatpush1.msra.mxu0 %v544
    %628 = vmatprep.subr.mxu0 0.0
    %629 = vmatpush1.msra.mxu0 %v545
    %630 = vmatprep.subr.mxu0 0.0
    %631 = vmatpush1.msra.mxu0 %v546
    %632 = vmatprep.subr.mxu0 0.0
    %633 = vmatpush1.msra.mxu0 %v547
    %634 = vmatprep.subr.mxu0 0.0
    %635 = vmatpush1.msra.mxu0 %v548
    %636 = vmatprep.subr.mxu0 0.0
    %637 = vmatpush1.msra.mxu0 %v549
    %638 = vmatprep.mubr.f32.mxu0 %v513
    %639 = vmatmul.mubr.f32.gmra.mrb[0].mxu0 %v511
    %v640 = vpop.f32.mrb[0].mxu0
    %v641 = vadd.f32 %v572, %v640
    %v642 = vpop.f32.mrb[0].mxu0
    %643 = vmatprep.mubr.f32.mxu0 %v514
    %644 = vmatmul.mubr.f32.gmra.mrb[0].mxu0 %v512
    %v645 = vpop.f32.mrb[0].mxu0
    %v646 = vadd.f32 %v572, %v645
    %v647 = vpop.f32.mrb[0].mxu0
    %648 = vdwg.mxu0
    %649 = vmatprep.subr.mxu0 0.0
    %650 = vmatpush1.msra.mxu0 %v550
    %651 = vmatprep.subr.mxu0 0.0
    %652 = vmatpush1.msra.mxu0 %v551
    %653 = vmatprep.subr.mxu0 0.0
    %654 = vmatpush1.msra.mxu0 %v552
    %655 = vmatprep.subr.mxu0 0.0
    %656 = vmatpush1.msra.mxu0 %v553
    %657 = vmatprep.subr.mxu0 0.0
    %658 = vmatpush1.msra.mxu0 %v554
    %659 = vmatprep.subr.mxu0 0.0
    %660 = vmatpush1.msra.mxu0 %v555
    %661 = vmatprep.subr.mxu0 0.0
    %662 = vmatpush1.msra.mxu0 %v556
    %663 = vmatprep.subr.mxu0 0.0
    %664 = vmatpush1.msra.mxu0 %v557
    %665 = vmatprep.subr.mxu0 0.0
    %666 = vmatpush1.msra.mxu0 %v558
    %667 = vmatprep.subr.mxu0 0.0
    %668 = vmatpush1.msra.mxu0 %v559
    %669 = vmatprep.subr.mxu0 0.0
    %670 = vmatpush1.msra.mxu0 %v560
    %671 = vmatprep.subr.mxu0 0.0
    %672 = vmatpush1.msra.mxu0 %v561
    %673 = vmatprep.subr.mxu0 0.0
    %674 = vmatpush1.msra.mxu0 %v562
    %675 = vmatprep.subr.mxu0 0.0
    %676 = vmatpush1.msra.mxu0 %v563
    %677 = vmatprep.subr.mxu0 0.0
    %678 = vmatpush1.msra.mxu0 %v564
    %679 = vmatprep.subr.mxu0 0.0
    %680 = vmatpush1.msra.mxu0 %v565
    %681 = vmatprep.subr.mxu0 0.0
    %682 = vmatpush1.msra.mxu0 0.0
    %683 = vmatprep.subr.mxu0 0.0
    %684 = vmatpush1.msra.mxu0 0.0
    %685 = vmatprep.subr.mxu0 0.0
    %686 = vmatpush1.msra.mxu0 0.0
    %687 = vmatprep.subr.mxu0 0.0
    %688 = vmatpush1.msra.mxu0 0.0
    %689 = vmatprep.subr.mxu0 0.0
    %690 = vmatpush1.msra.mxu0 0.0
    %691 = vmatprep.subr.mxu0 0.0
    %692 = vmatpush1.msra.mxu0 0.0
    %693 = vmatprep.subr.mxu0 0.0
    %694 = vmatpush1.msra.mxu0 0.0
    %695 = vmatprep.subr.mxu0 0.0
    %696 = vmatpush1.msra.mxu0 0.0
    %697 = vmatprep.subr.mxu0 0.0
    %698 = vmatpush1.msra.mxu0 0.0
    %699 = vmatprep.subr.mxu0 0.0
    %700 = vmatpush1.msra.mxu0 0.0
    %701 = vmatprep.subr.mxu0 0.0
    %702 = vmatpush1.msra.mxu0 0.0
    %703 = vmatprep.subr.mxu0 0.0
    %704 = vmatpush1.msra.mxu0 0.0
    %705 = vmatprep.subr.mxu0 0.0
    %706 = vmatpush1.msra.mxu0 0.0
    %707 = vmatprep.subr.mxu0 0.0
    %708 = vmatpush1.msra.mxu0 0.0
    %709 = vmatprep.subr.mxu0 0.0
    %710 = vmatpush1.msra.mxu0 0.0
    %711 = vmatprep.subr.mxu0 0.0
    %712 = vmatpush1.msra.mxu0 0.0
    %713 = vmatprep.mubr.f32.mxu0 0.0
    %714 = vmatmul.mubr.f32.gmra.mrb[0].mxu0 %v515
    %v715 = vpop.f32.mrb[0].mxu0
    %v716 = vadd.f32 %v641, %v715
    %v717 = vpop.f32.mrb[0].mxu0
    %718 = vmatprep.mubr.f32.mxu0 0.0
    %719 = vmatmul.mubr.f32.gmra.mrb[0].mxu0 %v516
    %v720 = vpop.f32.mrb[0].mxu0
    %v721 = vadd.f32 %v646, %v720
    %v722 = vpop.f32.mrb[0].mxu0
    %723 = vdwg.mxu0
    %v724 = vmax.f32 %v716, 0.0
    %v725 = vmax.f32 %v721, 0.0
    %726 = vst [vmem:[#allocation2 + $0x8] sm:$0xff] %v724
    %727 = vst [vmem:[#allocation2 + $0x10] sm:$0xff] %v725
    %v728 = vld [vmem:[#allocation2 + $0x4] sm:$0xff]
    %v729 = vld [vmem:[#allocation2 + $0xc] sm:$0xff]
    %v730 = vld [vmem:[#allocation2 + $0x8] sm:$0xff]
    %v731 = vld [vmem:[#allocation2 + $0x10] sm:$0xff]
    %v732 = vld [vmem:[#allocation2 + $0x14] sm:$0xff]
    %s733 = scalar_lea.vmem [#allocation3], 1152
    %v734 = vld [vmem:[%s733] sm:$0xff]
    %v735 = vld [vmem:[%s733 + $0x8] sm:$0xff]
    %v736 = vld [vmem:[%s733 + $0x10] sm:$0xff]
    %v737 = vld [vmem:[%s733 + $0x18] sm:$0xff]
    %v738 = vld [vmem:[%s733 + $0x20] sm:$0xff]
    %v739 = vld [vmem:[%s733 + $0x28] sm:$0xff]
    %v740 = vld [vmem:[%s733 + $0x30] sm:$0xff]
    %v741 = vld [vmem:[%s733 + $0x38] sm:$0xff]
    %v742 = vld [vmem:[%s733 + $0x40] sm:$0xff]
    %v743 = vld [vmem:[%s733 + $0x48] sm:$0xff]
    %v744 = vld [vmem:[%s733 + $0x50] sm:$0xff]
    %v745 = vld [vmem:[%s733 + $0x58] sm:$0xff]
    %v746 = vld [vmem:[%s733 + $0x60] sm:$0xff]
    %v747 = vld [vmem:[%s733 + $0x68] sm:$0xff]
    %v748 = vld [vmem:[%s733 + $0x70] sm:$0xff]
    %v749 = vld [vmem:[%s733 + $0x78] sm:$0xff]
    %v750 = vld [vmem:[%s733 + $0x80] sm:$0xff]
    %v751 = vld [vmem:[%s733 + $0x88] sm:$0xff]
    %v752 = vld [vmem:[%s733 + $0x90] sm:$0xff]
    %v753 = vld [vmem:[%s733 + $0x98] sm:$0xff]
    %v754 = vld [vmem:[%s733 + $0xa0] sm:$0xff]
    %v755 = vld [vmem:[%s733 + $0xa8] sm:$0xff]
    %v756 = vld [vmem:[%s733 + $0xb0] sm:$0xff]
    %v757 = vld [vmem:[%s733 + $0xb8] sm:$0xff]
    %v758 = vld [vmem:[%s733 + $0xc0] sm:$0xff]
    %v759 = vld [vmem:[%s733 + $0xc8] sm:$0xff]
    %v760 = vld [vmem:[%s733 + $0xd0] sm:$0xff]
    %v761 = vld [vmem:[%s733 + $0xd8] sm:$0xff]
    %v762 = vld [vmem:[%s733 + $0xe0] sm:$0xff]
    %v763 = vld [vmem:[%s733 + $0xe8] sm:$0xff]
    %v764 = vld [vmem:[%s733 + $0xf0] sm:$0xff]
    %v765 = vld [vmem:[%s733 + $0xf8] sm:$0xff]
    %v766 = vld [vmem:[%s733 + $0x100] sm:$0xff]
    %v767 = vld [vmem:[%s733 + $0x108] sm:$0xff]
    %v768 = vld [vmem:[%s733 + $0x110] sm:$0xff]
    %v769 = vld [vmem:[%s733 + $0x118] sm:$0xff]
    %v770 = vld [vmem:[%s733 + $0x120] sm:$0xff]
    %v771 = vld [vmem:[%s733 + $0x128] sm:$0xff]
    %v772 = vld [vmem:[%s733 + $0x130] sm:$0xff]
    %v773 = vld [vmem:[%s733 + $0x138] sm:$0xff]
    %v774 = vld [vmem:[%s733 + $0x140] sm:$0xff]
    %v775 = vld [vmem:[%s733 + $0x148] sm:$0xff]
    %v776 = vld [vmem:[%s733 + $0x150] sm:$0xff]
    %v777 = vld [vmem:[%s733 + $0x158] sm:$0xff]
    %v778 = vld [vmem:[%s733 + $0x160] sm:$0xff]
    %v779 = vld [vmem:[%s733 + $0x168] sm:$0xff]
    %v780 = vld [vmem:[%s733 + $0x170] sm:$0xff]
    %v781 = vld [vmem:[%s733 + $0x178] sm:$0xff]
    %s782 = scalar_lea.vmem [#allocation5], 3
    %v783 = vld [vmem:[%s782] sm:$0x1]
    %v785 = vlaneseq
    %v786 = vshrl.u32 %v785, 7
    %v787 = vsub.s32 0, %v786
    %v788 = vrot.slane %v783, %v787
    %790 = vmatprep.subr.mxu0 0.0
    %791 = vmatpush1.msra.mxu0 %v734
    %792 = vmatprep.subr.mxu0 0.0
    %793 = vmatpush1.msra.mxu0 %v735
    %794 = vmatprep.subr.mxu0 0.0
    %795 = vmatpush1.msra.mxu0 %v736
    %796 = vmatprep.subr.mxu0 0.0
    %797 = vmatpush1.msra.mxu0 %v737
    %798 = vmatprep.subr.mxu0 0.0
    %799 = vmatpush1.msra.mxu0 %v738
    %800 = vmatprep.subr.mxu0 0.0
    %801 = vmatpush1.msra.mxu0 %v739
    %802 = vmatprep.subr.mxu0 0.0
    %803 = vmatpush1.msra.mxu0 %v740
    %804 = vmatprep.subr.mxu0 0.0
    %805 = vmatpush1.msra.mxu0 %v741
    %806 = vmatprep.subr.mxu0 0.0
    %807 = vmatpush1.msra.mxu0 %v742
    %808 = vmatprep.subr.mxu0 0.0
    %809 = vmatpush1.msra.mxu0 %v743
    %810 = vmatprep.subr.mxu0 0.0
    %811 = vmatpush1.msra.mxu0 %v744
    %812 = vmatprep.subr.mxu0 0.0
    %813 = vmatpush1.msra.mxu0 %v745
    %814 = vmatprep.subr.mxu0 0.0
    %815 = vmatpush1.msra.mxu0 %v746
    %816 = vmatprep.subr.mxu0 0.0
    %817 = vmatpush1.msra.mxu0 %v747
    %818 = vmatprep.subr.mxu0 0.0
    %819 = vmatpush1.msra.mxu0 %v748
    %820 = vmatprep.subr.mxu0 0.0
    %821 = vmatpush1.msra.mxu0 %v749
    %822 = vmatprep.subr.mxu0 0.0
    %823 = vmatpush1.msra.mxu0 %v750
    %824 = vmatprep.subr.mxu0 0.0
    %825 = vmatpush1.msra.mxu0 %v751
    %826 = vmatprep.subr.mxu0 0.0
    %827 = vmatpush1.msra.mxu0 %v752
    %828 = vmatprep.subr.mxu0 0.0
    %829 = vmatpush1.msra.mxu0 %v753
    %830 = vmatprep.subr.mxu0 0.0
    %831 = vmatpush1.msra.mxu0 %v754
    %832 = vmatprep.subr.mxu0 0.0
    %833 = vmatpush1.msra.mxu0 %v755
    %834 = vmatprep.subr.mxu0 0.0
    %835 = vmatpush1.msra.mxu0 %v756
    %836 = vmatprep.subr.mxu0 0.0
    %837 = vmatpush1.msra.mxu0 %v757
    %838 = vmatprep.subr.mxu0 0.0
    %839 = vmatpush1.msra.mxu0 %v758
    %840 = vmatprep.subr.mxu0 0.0
    %841 = vmatpush1.msra.mxu0 %v759
    %842 = vmatprep.subr.mxu0 0.0
    %843 = vmatpush1.msra.mxu0 %v760
    %844 = vmatprep.subr.mxu0 0.0
    %845 = vmatpush1.msra.mxu0 %v761
    %846 = vmatprep.subr.mxu0 0.0
    %847 = vmatpush1.msra.mxu0 %v762
    %848 = vmatprep.subr.mxu0 0.0
    %849 = vmatpush1.msra.mxu0 %v763
    %850 = vmatprep.subr.mxu0 0.0
    %851 = vmatpush1.msra.mxu0 %v764
    %852 = vmatprep.subr.mxu0 0.0
    %853 = vmatpush1.msra.mxu0 %v765
    %854 = vmatprep.mubr.f32.mxu0 %v730
    %855 = vmatmul.mubr.f32.gmra.mrb[0].mxu0 %v728
    %v856 = vpop.f32.mrb[0].mxu0
    %v857 = vadd.f32 %v788, %v856
    %v858 = vpop.f32.mrb[0].mxu0
    %859 = vmatprep.mubr.f32.mxu0 %v731
    %860 = vmatmul.mubr.f32.gmra.mrb[0].mxu0 %v729
    %v861 = vpop.f32.mrb[0].mxu0
    %v862 = vadd.f32 %v788, %v861
    %v863 = vpop.f32.mrb[0].mxu0
    %864 = vdwg.mxu0
    %865 = vmatprep.subr.mxu0 0.0
    %866 = vmatpush1.msra.mxu0 %v766
    %867 = vmatprep.subr.mxu0 0.0
    %868 = vmatpush1.msra.mxu0 %v767
    %869 = vmatprep.subr.mxu0 0.0
    %870 = vmatpush1.msra.mxu0 %v768
    %871 = vmatprep.subr.mxu0 0.0
    %872 = vmatpush1.msra.mxu0 %v769
    %873 = vmatprep.subr.mxu0 0.0
    %874 = vmatpush1.msra.mxu0 %v770
    %875 = vmatprep.subr.mxu0 0.0
    %876 = vmatpush1.msra.mxu0 %v771
    %877 = vmatprep.subr.mxu0 0.0
    %878 = vmatpush1.msra.mxu0 %v772
    %879 = vmatprep.subr.mxu0 0.0
    %880 = vmatpush1.msra.mxu0 %v773
    %881 = vmatprep.subr.mxu0 0.0
    %882 = vmatpush1.msra.mxu0 %v774
    %883 = vmatprep.subr.mxu0 0.0
    %884 = vmatpush1.msra.mxu0 %v775
    %885 = vmatprep.subr.mxu0 0.0
    %886 = vmatpush1.msra.mxu0 %v776
    %887 = vmatprep.subr.mxu0 0.0
    %888 = vmatpush1.msra.mxu0 %v777
    %889 = vmatprep.subr.mxu0 0.0
    %890 = vmatpush1.msra.mxu0 %v778
    %891 = vmatprep.subr.mxu0 0.0
    %892 = vmatpush1.msra.mxu0 %v779
    %893 = vmatprep.subr.mxu0 0.0
    %894 = vmatpush1.msra.mxu0 %v780
    %895 = vmatprep.subr.mxu0 0.0
    %896 = vmatpush1.msra.mxu0 %v781
    %897 = vmatprep.subr.mxu0 0.0
    %898 = vmatpush1.msra.mxu0 0.0
    %899 = vmatprep.subr.mxu0 0.0
    %900 = vmatpush1.msra.mxu0 0.0
    %901 = vmatprep.subr.mxu0 0.0
    %902 = vmatpush1.msra.mxu0 0.0
    %903 = vmatprep.subr.mxu0 0.0
    %904 = vmatpush1.msra.mxu0 0.0
    %905 = vmatprep.subr.mxu0 0.0
    %906 = vmatpush1.msra.mxu0 0.0
    %907 = vmatprep.subr.mxu0 0.0
    %908 = vmatpush1.msra.mxu0 0.0
    %909 = vmatprep.subr.mxu0 0.0
    %910 = vmatpush1.msra.mxu0 0.0
    %911 = vmatprep.subr.mxu0 0.0
    %912 = vmatpush1.msra.mxu0 0.0
    %913 = vmatprep.subr.mxu0 0.0
    %914 = vmatpush1.msra.mxu0 0.0
    %915 = vmatprep.subr.mxu0 0.0
    %916 = vmatpush1.msra.mxu0 0.0
    %917 = vmatprep.subr.mxu0 0.0
    %918 = vmatpush1.msra.mxu0 0.0
    %919 = vmatprep.subr.mxu0 0.0
    %920 = vmatpush1.msra.mxu0 0.0
    %921 = vmatprep.subr.mxu0 0.0
    %922 = vmatpush1.msra.mxu0 0.0
    %923 = vmatprep.subr.mxu0 0.0
    %924 = vmatpush1.msra.mxu0 0.0
    %925 = vmatprep.subr.mxu0 0.0
    %926 = vmatpush1.msra.mxu0 0.0
    %927 = vmatprep.subr.mxu0 0.0
    %928 = vmatpush1.msra.mxu0 0.0
    %929 = vmatprep.mubr.f32.mxu0 0.0
    %930 = vmatmul.mubr.f32.gmra.mrb[0].mxu0 %v729
    %v931 = vpop.f32.mrb[0].mxu0
    %v932 = vadd.f32 %v857, %v931
    %v933 = vpop.f32.mrb[0].mxu0
    %934 = vmatprep.mubr.f32.mxu0 0.0
    %935 = vmatmul.mubr.f32.gmra.mrb[0].mxu0 %v732
    %v936 = vpop.f32.mrb[0].mxu0
    %v937 = vadd.f32 %v862, %v936
    %v938 = vpop.f32.mrb[0].mxu0
    %939 = vdwg.mxu0
    %v940 = vmax.f32 %v932, 0.0
    %v941 = vmax.f32 %v937, 0.0
    %942 = vst [vmem:[#allocation2 + $0x8] sm:$0xff] %v940
    %943 = vst [vmem:[#allocation2 + $0x10] sm:$0xff] %v941
    %v944 = vld [vmem:[#allocation2 + $0x5] sm:$0xff]
    %v945 = vld [vmem:[#allocation2 + $0xd] sm:$0xff]
    %v946 = vld [vmem:[#allocation2 + $0x8] sm:$0xff]
    %v947 = vld [vmem:[#allocation2 + $0x10] sm:$0xff]
    %v948 = vld [vmem:[#allocation2 + $0xb] sm:$0xff]
    %v949 = vld [vmem:[#allocation2 + $0x13] sm:$0xff]
    %s950 = scalar_lea.vmem [#allocation3], 1536
    %v951 = vld [vmem:[%s950] sm:$0xff]
    %v952 = vld [vmem:[%s950 + $0x8] sm:$0xff]
    %v953 = vld [vmem:[%s950 + $0x10] sm:$0xff]
    %v954 = vld [vmem:[%s950 + $0x18] sm:$0xff]
    %v955 = vld [vmem:[%s950 + $0x20] sm:$0xff]
    %v956 = vld [vmem:[%s950 + $0x28] sm:$0xff]
    %v957 = vld [vmem:[%s950 + $0x30] sm:$0xff]
    %v958 = vld [vmem:[%s950 + $0x38] sm:$0xff]
    %v959 = vld [vmem:[%s950 + $0x40] sm:$0xff]
    %v960 = vld [vmem:[%s950 + $0x48] sm:$0xff]
    %v961 = vld [vmem:[%s950 + $0x50] sm:$0xff]
    %v962 = vld [vmem:[%s950 + $0x58] sm:$0xff]
    %v963 = vld [vmem:[%s950 + $0x60] sm:$0xff]
    %v964 = vld [vmem:[%s950 + $0x68] sm:$0xff]
    %v965 = vld [vmem:[%s950 + $0x70] sm:$0xff]
    %v966 = vld [vmem:[%s950 + $0x78] sm:$0xff]
    %v967 = vld [vmem:[%s950 + $0x80] sm:$0xff]
    %v968 = vld [vmem:[%s950 + $0x88] sm:$0xff]
    %v969 = vld [vmem:[%s950 + $0x90] sm:$0xff]
    %v970 = vld [vmem:[%s950 + $0x98] sm:$0xff]
    %v971 = vld [vmem:[%s950 + $0xa0] sm:$0xff]
    %v972 = vld [vmem:[%s950 + $0xa8] sm:$0xff]
    %v973 = vld [vmem:[%s950 + $0xb0] sm:$0xff]
    %v974 = vld [vmem:[%s950 + $0xb8] sm:$0xff]
    %v975 = vld [vmem:[%s950 + $0xc0] sm:$0xff]
    %v976 = vld [vmem:[%s950 + $0xc8] sm:$0xff]
    %v977 = vld [vmem:[%s950 + $0xd0] sm:$0xff]
    %v978 = vld [vmem:[%s950 + $0xd8] sm:$0xff]
    %v979 = vld [vmem:[%s950 + $0xe0] sm:$0xff]
    %v980 = vld [vmem:[%s950 + $0xe8] sm:$0xff]
    %v981 = vld [vmem:[%s950 + $0xf0] sm:$0xff]
    %v982 = vld [vmem:[%s950 + $0xf8] sm:$0xff]
    %v983 = vld [vmem:[%s950 + $0x100] sm:$0xff]
    %v984 = vld [vmem:[%s950 + $0x108] sm:$0xff]
    %v985 = vld [vmem:[%s950 + $0x110] sm:$0xff]
    %v986 = vld [vmem:[%s950 + $0x118] sm:$0xff]
    %v987 = vld [vmem:[%s950 + $0x120] sm:$0xff]
    %v988 = vld [vmem:[%s950 + $0x128] sm:$0xff]
    %v989 = vld [vmem:[%s950 + $0x130] sm:$0xff]
    %v990 = vld [vmem:[%s950 + $0x138] sm:$0xff]
    %v991 = vld [vmem:[%s950 + $0x140] sm:$0xff]
    %v992 = vld [vmem:[%s950 + $0x148] sm:$0xff]
    %v993 = vld [vmem:[%s950 + $0x150] sm:$0xff]
    %v994 = vld [vmem:[%s950 + $0x158] sm:$0xff]
    %v995 = vld [vmem:[%s950 + $0x160] sm:$0xff]
    %v996 = vld [vmem:[%s950 + $0x168] sm:$0xff]
    %v997 = vld [vmem:[%s950 + $0x170] sm:$0xff]
    %v998 = vld [vmem:[%s950 + $0x178] sm:$0xff]
    %s999 = scalar_lea.vmem [#allocation5], 4
    %v1000 = vld [vmem:[%s999] sm:$0x1]
    %v1002 = vlaneseq
    %v1003 = vshrl.u32 %v1002, 7
    %v1004 = vsub.s32 0, %v1003
    %v1005 = vrot.slane %v1000, %v1004
    %1007 = vmatprep.subr.mxu0 0.0
    %1008 = vmatpush1.msra.mxu0 %v951
    %1009 = vmatprep.subr.mxu0 0.0
    %1010 = vmatpush1.msra.mxu0 %v952
    %1011 = vmatprep.subr.mxu0 0.0
    %1012 = vmatpush1.msra.mxu0 %v953
    %1013 = vmatprep.subr.mxu0 0.0
    %1014 = vmatpush1.msra.mxu0 %v954
    %1015 = vmatprep.subr.mxu0 0.0
    %1016 = vmatpush1.msra.mxu0 %v955
    %1017 = vmatprep.subr.mxu0 0.0
    %1018 = vmatpush1.msra.mxu0 %v956
    %1019 = vmatprep.subr.mxu0 0.0
    %1020 = vmatpush1.msra.mxu0 %v957
    %1021 = vmatprep.subr.mxu0 0.0
    %1022 = vmatpush1.msra.mxu0 %v958
    %1023 = vmatprep.subr.mxu0 0.0
    %1024 = vmatpush1.msra.mxu0 %v959
    %1025 = vmatprep.subr.mxu0 0.0
    %1026 = vmatpush1.msra.mxu0 %v960
    %1027 = vmatprep.subr.mxu0 0.0
    %1028 = vmatpush1.msra.mxu0 %v961
    %1029 = vmatprep.subr.mxu0 0.0
    %1030 = vmatpush1.msra.mxu0 %v962
    %1031 = vmatprep.subr.mxu0 0.0
    %1032 = vmatpush1.msra.mxu0 %v963
    %1033 = vmatprep.subr.mxu0 0.0
    %1034 = vmatpush1.msra.mxu0 %v964
    %1035 = vmatprep.subr.mxu0 0.0
    %1036 = vmatpush1.msra.mxu0 %v965
    %1037 = vmatprep.subr.mxu0 0.0
    %1038 = vmatpush1.msra.mxu0 %v966
    %1039 = vmatprep.subr.mxu0 0.0
    %1040 = vmatpush1.msra.mxu0 %v967
    %1041 = vmatprep.subr.mxu0 0.0
    %1042 = vmatpush1.msra.mxu0 %v968
    %1043 = vmatprep.subr.mxu0 0.0
    %1044 = vmatpush1.msra.mxu0 %v969
    %1045 = vmatprep.subr.mxu0 0.0
    %1046 = vmatpush1.msra.mxu0 %v970
    %1047 = vmatprep.subr.mxu0 0.0
    %1048 = vmatpush1.msra.mxu0 %v971
    %1049 = vmatprep.subr.mxu0 0.0
    %1050 = vmatpush1.msra.mxu0 %v972
    %1051 = vmatprep.subr.mxu0 0.0
    %1052 = vmatpush1.msra.mxu0 %v973
    %1053 = vmatprep.subr.mxu0 0.0
    %1054 = vmatpush1.msra.mxu0 %v974
    %1055 = vmatprep.subr.mxu0 0.0
    %1056 = vmatpush1.msra.mxu0 %v975
    %1057 = vmatprep.subr.mxu0 0.0
    %1058 = vmatpush1.msra.mxu0 %v976
    %1059 = vmatprep.subr.mxu0 0.0
    %1060 = vmatpush1.msra.mxu0 %v977
    %1061 = vmatprep.subr.mxu0 0.0
    %1062 = vmatpush1.msra.mxu0 %v978
    %1063 = vmatprep.subr.mxu0 0.0
    %1064 = vmatpush1.msra.mxu0 %v979
    %1065 = vmatprep.subr.mxu0 0.0
    %1066 = vmatpush1.msra.mxu0 %v980
    %1067 = vmatprep.subr.mxu0 0.0
    %1068 = vmatpush1.msra.mxu0 %v981
    %1069 = vmatprep.subr.mxu0 0.0
    %1070 = vmatpush1.msra.mxu0 %v982
    %1071 = vmatprep.mubr.f32.mxu0 %v946
    %1072 = vmatmul.mubr.f32.gmra.mrb[0].mxu0 %v944
    %v1073 = vpop.f32.mrb[0].mxu0
    %v1074 = vadd.f32 %v1005, %v1073
    %v1075 = vpop.f32.mrb[0].mxu0
    %1076 = vmatprep.mubr.f32.mxu0 %v947
    %1077 = vmatmul.mubr.f32.gmra.mrb[0].mxu0 %v945
    %v1078 = vpop.f32.mrb[0].mxu0
    %v1079 = vadd.f32 %v1005, %v1078
    %v1080 = vpop.f32.mrb[0].mxu0
    %1081 = vdwg.mxu0
    %1082 = vmatprep.subr.mxu0 0.0
    %1083 = vmatpush1.msra.mxu0 %v983
    %1084 = vmatprep.subr.mxu0 0.0
    %1085 = vmatpush1.msra.mxu0 %v984
    %1086 = vmatprep.subr.mxu0 0.0
    %1087 = vmatpush1.msra.mxu0 %v985
    %1088 = vmatprep.subr.mxu0 0.0
    %1089 = vmatpush1.msra.mxu0 %v986
    %1090 = vmatprep.subr.mxu0 0.0
    %1091 = vmatpush1.msra.mxu0 %v987
    %1092 = vmatprep.subr.mxu0 0.0
    %1093 = vmatpush1.msra.mxu0 %v988
    %1094 = vmatprep.subr.mxu0 0.0
    %1095 = vmatpush1.msra.mxu0 %v989
    %1096 = vmatprep.subr.mxu0 0.0
    %1097 = vmatpush1.msra.mxu0 %v990
    %1098 = vmatprep.subr.mxu0 0.0
    %1099 = vmatpush1.msra.mxu0 %v991
    %1100 = vmatprep.subr.mxu0 0.0
    %1101 = vmatpush1.msra.mxu0 %v992
    %1102 = vmatprep.subr.mxu0 0.0
    %1103 = vmatpush1.msra.mxu0 %v993
    %1104 = vmatprep.subr.mxu0 0.0
    %1105 = vmatpush1.msra.mxu0 %v994
    %1106 = vmatprep.subr.mxu0 0.0
    %1107 = vmatpush1.msra.mxu0 %v995
    %1108 = vmatprep.subr.mxu0 0.0
    %1109 = vmatpush1.msra.mxu0 %v996
    %1110 = vmatprep.subr.mxu0 0.0
    %1111 = vmatpush1.msra.mxu0 %v997
    %1112 = vmatprep.subr.mxu0 0.0
    %1113 = vmatpush1.msra.mxu0 %v998
    %1114 = vmatprep.subr.mxu0 0.0
    %1115 = vmatpush1.msra.mxu0 0.0
    %1116 = vmatprep.subr.mxu0 0.0
    %1117 = vmatpush1.msra.mxu0 0.0
    %1118 = vmatprep.subr.mxu0 0.0
    %1119 = vmatpush1.msra.mxu0 0.0
    %1120 = vmatprep.subr.mxu0 0.0
    %1121 = vmatpush1.msra.mxu0 0.0
    %1122 = vmatprep.subr.mxu0 0.0
    %1123 = vmatpush1.msra.mxu0 0.0
    %1124 = vmatprep.subr.mxu0 0.0
    %1125 = vmatpush1.msra.mxu0 0.0
    %1126 = vmatprep.subr.mxu0 0.0
    %1127 = vmatpush1.msra.mxu0 0.0
    %1128 = vmatprep.subr.mxu0 0.0
    %1129 = vmatpush1.msra.mxu0 0.0
    %1130 = vmatprep.subr.mxu0 0.0
    %1131 = vmatpush1.msra.mxu0 0.0
    %1132 = vmatprep.subr.mxu0 0.0
    %1133 = vmatpush1.msra.mxu0 0.0
    %1134 = vmatprep.subr.mxu0 0.0
    %1135 = vmatpush1.msra.mxu0 0.0
    %1136 = vmatprep.subr.mxu0 0.0
    %1137 = vmatpush1.msra.mxu0 0.0
    %1138 = vmatprep.subr.mxu0 0.0
    %1139 = vmatpush1.msra.mxu0 0.0
    %1140 = vmatprep.subr.mxu0 0.0
    %1141 = vmatpush1.msra.mxu0 0.0
    %1142 = vmatprep.subr.mxu0 0.0
    %1143 = vmatpush1.msra.mxu0 0.0
    %1144 = vmatprep.subr.mxu0 0.0
    %1145 = vmatpush1.msra.mxu0 0.0
    %1146 = vmatprep.mubr.f32.mxu0 0.0
    %1147 = vmatmul.mubr.f32.gmra.mrb[0].mxu0 %v948
    %v1148 = vpop.f32.mrb[0].mxu0
    %v1149 = vadd.f32 %v1074, %v1148
    %v1150 = vpop.f32.mrb[0].mxu0
    %1151 = vmatprep.mubr.f32.mxu0 0.0
    %1152 = vmatmul.mubr.f32.gmra.mrb[0].mxu0 %v949
    %v1153 = vpop.f32.mrb[0].mxu0
    %v1154 = vadd.f32 %v1079, %v1153
    %v1155 = vpop.f32.mrb[0].mxu0
    %1156 = vdwg.mxu0
    %v1157 = vmax.f32 %v1149, 0.0
    %v1158 = vmax.f32 %v1154, 0.0
    %1159 = vst [vmem:[#allocation2 + $0x8] sm:$0xff] %v1157
    %1160 = vst [vmem:[#allocation2 + $0x10] sm:$0xff] %v1158
    %v1161 = vld [vmem:[#allocation2 + $0x6] sm:$0xff]
    %v1162 = vld [vmem:[#allocation2 + $0xe] sm:$0xff]
    %v1163 = vld [vmem:[#allocation2 + $0x8] sm:$0xff]
    %v1164 = vld [vmem:[#allocation2 + $0x10] sm:$0xff]
    %v1165 = vld [vmem:[#allocation2 + $0xa] sm:$0xff]
    %v1166 = vld [vmem:[#allocation2 + $0x12] sm:$0xff]
    %s1167 = scalar_lea.vmem [#allocation3], 1920
    %v1168 = vld [vmem:[%s1167] sm:$0xff]
    %v1169 = vld [vmem:[%s1167 + $0x8] sm:$0xff]
    %v1170 = vld [vmem:[%s1167 + $0x10] sm:$0xff]
    %v1171 = vld [vmem:[%s1167 + $0x18] sm:$0xff]
    %v1172 = vld [vmem:[%s1167 + $0x20] sm:$0xff]
    %v1173 = vld [vmem:[%s1167 + $0x28] sm:$0xff]
    %v1174 = vld [vmem:[%s1167 + $0x30] sm:$0xff]
    %v1175 = vld [vmem:[%s1167 + $0x38] sm:$0xff]
    %v1176 = vld [vmem:[%s1167 + $0x40] sm:$0xff]
    %v1177 = vld [vmem:[%s1167 + $0x48] sm:$0xff]
    %v1178 = vld [vmem:[%s1167 + $0x50] sm:$0xff]
    %v1179 = vld [vmem:[%s1167 + $0x58] sm:$0xff]
    %v1180 = vld [vmem:[%s1167 + $0x60] sm:$0xff]
    %v1181 = vld [vmem:[%s1167 + $0x68] sm:$0xff]
    %v1182 = vld [vmem:[%s1167 + $0x70] sm:$0xff]
    %v1183 = vld [vmem:[%s1167 + $0x78] sm:$0xff]
    %v1184 = vld [vmem:[%s1167 + $0x80] sm:$0xff]
    %v1185 = vld [vmem:[%s1167 + $0x88] sm:$0xff]
    %v1186 = vld [vmem:[%s1167 + $0x90] sm:$0xff]
    %v1187 = vld [vmem:[%s1167 + $0x98] sm:$0xff]
    %v1188 = vld [vmem:[%s1167 + $0xa0] sm:$0xff]
    %v1189 = vld [vmem:[%s1167 + $0xa8] sm:$0xff]
    %v1190 = vld [vmem:[%s1167 + $0xb0] sm:$0xff]
    %v1191 = vld [vmem:[%s1167 + $0xb8] sm:$0xff]
    %v1192 = vld [vmem:[%s1167 + $0xc0] sm:$0xff]
    %v1193 = vld [vmem:[%s1167 + $0xc8] sm:$0xff]
    %v1194 = vld [vmem:[%s1167 + $0xd0] sm:$0xff]
    %v1195 = vld [vmem:[%s1167 + $0xd8] sm:$0xff]
    %v1196 = vld [vmem:[%s1167 + $0xe0] sm:$0xff]
    %v1197 = vld [vmem:[%s1167 + $0xe8] sm:$0xff]
    %v1198 = vld [vmem:[%s1167 + $0xf0] sm:$0xff]
    %v1199 = vld [vmem:[%s1167 + $0xf8] sm:$0xff]
    %v1200 = vld [vmem:[%s1167 + $0x100] sm:$0xff]
    %v1201 = vld [vmem:[%s1167 + $0x108] sm:$0xff]
    %v1202 = vld [vmem:[%s1167 + $0x110] sm:$0xff]
    %v1203 = vld [vmem:[%s1167 + $0x118] sm:$0xff]
    %v1204 = vld [vmem:[%s1167 + $0x120] sm:$0xff]
    %v1205 = vld [vmem:[%s1167 + $0x128] sm:$0xff]
    %v1206 = vld [vmem:[%s1167 + $0x130] sm:$0xff]
    %v1207 = vld [vmem:[%s1167 + $0x138] sm:$0xff]
    %v1208 = vld [vmem:[%s1167 + $0x140] sm:$0xff]
    %v1209 = vld [vmem:[%s1167 + $0x148] sm:$0xff]
    %v1210 = vld [vmem:[%s1167 + $0x150] sm:$0xff]
    %v1211 = vld [vmem:[%s1167 + $0x158] sm:$0xff]
    %v1212 = vld [vmem:[%s1167 + $0x160] sm:$0xff]
    %v1213 = vld [vmem:[%s1167 + $0x168] sm:$0xff]
    %v1214 = vld [vmem:[%s1167 + $0x170] sm:$0xff]
    %v1215 = vld [vmem:[%s1167 + $0x178] sm:$0xff]
    %s1216 = scalar_lea.vmem [#allocation5], 5
    %v1217 = vld [vmem:[%s1216] sm:$0x1]
    %v1219 = vlaneseq
    %v1220 = vshrl.u32 %v1219, 7
    %v1221 = vsub.s32 0, %v1220
    %v1222 = vrot.slane %v1217, %v1221
    %1224 = vmatprep.subr.mxu0 0.0
    %1225 = vmatpush1.msra.mxu0 %v1168
    %1226 = vmatprep.subr.mxu0 0.0
    %1227 = vmatpush1.msra.mxu0 %v1169
    %1228 = vmatprep.subr.mxu0 0.0
    %1229 = vmatpush1.msra.mxu0 %v1170
    %1230 = vmatprep.subr.mxu0 0.0
    %1231 = vmatpush1.msra.mxu0 %v1171
    %1232 = vmatprep.subr.mxu0 0.0
    %1233 = vmatpush1.msra.mxu0 %v1172
    %1234 = vmatprep.subr.mxu0 0.0
    %1235 = vmatpush1.msra.mxu0 %v1173
    %1236 = vmatprep.subr.mxu0 0.0
    %1237 = vmatpush1.msra.mxu0 %v1174
    %1238 = vmatprep.subr.mxu0 0.0
    %1239 = vmatpush1.msra.mxu0 %v1175
    %1240 = vmatprep.subr.mxu0 0.0
    %1241 = vmatpush1.msra.mxu0 %v1176
    %1242 = vmatprep.subr.mxu0 0.0
    %1243 = vmatpush1.msra.mxu0 %v1177
    %1244 = vmatprep.subr.mxu0 0.0
    %1245 = vmatpush1.msra.mxu0 %v1178
    %1246 = vmatprep.subr.mxu0 0.0
    %1247 = vmatpush1.msra.mxu0 %v1179
    %1248 = vmatprep.subr.mxu0 0.0
    %1249 = vmatpush1.msra.mxu0 %v1180
    %1250 = vmatprep.subr.mxu0 0.0
    %1251 = vmatpush1.msra.mxu0 %v1181
    %1252 = vmatprep.subr.mxu0 0.0
    %1253 = vmatpush1.msra.mxu0 %v1182
    %1254 = vmatprep.subr.mxu0 0.0
    %1255 = vmatpush1.msra.mxu0 %v1183
    %1256 = vmatprep.subr.mxu0 0.0
    %1257 = vmatpush1.msra.mxu0 %v1184
    %1258 = vmatprep.subr.mxu0 0.0
    %1259 = vmatpush1.msra.mxu0 %v1185
    %1260 = vmatprep.subr.mxu0 0.0
    %1261 = vmatpush1.msra.mxu0 %v1186
    %1262 = vmatprep.subr.mxu0 0.0
    %1263 = vmatpush1.msra.mxu0 %v1187
    %1264 = vmatprep.subr.mxu0 0.0
    %1265 = vmatpush1.msra.mxu0 %v1188
    %1266 = vmatprep.subr.mxu0 0.0
    %1267 = vmatpush1.msra.mxu0 %v1189
    %1268 = vmatprep.subr.mxu0 0.0
    %1269 = vmatpush1.msra.mxu0 %v1190
    %1270 = vmatprep.subr.mxu0 0.0
    %1271 = vmatpush1.msra.mxu0 %v1191
    %1272 = vmatprep.subr.mxu0 0.0
    %1273 = vmatpush1.msra.mxu0 %v1192
    %1274 = vmatprep.subr.mxu0 0.0
    %1275 = vmatpush1.msra.mxu0 %v1193
    %1276 = vmatprep.subr.mxu0 0.0
    %1277 = vmatpush1.msra.mxu0 %v1194
    %1278 = vmatprep.subr.mxu0 0.0
    %1279 = vmatpush1.msra.mxu0 %v1195
    %1280 = vmatprep.subr.mxu0 0.0
    %1281 = vmatpush1.msra.mxu0 %v1196
    %1282 = vmatprep.subr.mxu0 0.0
    %1283 = vmatpush1.msra.mxu0 %v1197
    %1284 = vmatprep.subr.mxu0 0.0
    %1285 = vmatpush1.msra.mxu0 %v1198
    %1286 = vmatprep.subr.mxu0 0.0
    %1287 = vmatpush1.msra.mxu0 %v1199
    %1288 = vmatprep.mubr.f32.mxu0 %v1163
    %1289 = vmatmul.mubr.f32.gmra.mrb[0].mxu0 %v1161
    %v1290 = vpop.f32.mrb[0].mxu0
    %v1291 = vadd.f32 %v1222, %v1290
    %v1292 = vpop.f32.mrb[0].mxu0
    %1293 = vmatprep.mubr.f32.mxu0 %v1164
    %1294 = vmatmul.mubr.f32.gmra.mrb[0].mxu0 %v1162
    %v1295 = vpop.f32.mrb[0].mxu0
    %v1296 = vadd.f32 %v1222, %v1295
    %v1297 = vpop.f32.mrb[0].mxu0
    %1298 = vdwg.mxu0
    %1299 = vmatprep.subr.mxu0 0.0
    %1300 = vmatpush1.msra.mxu0 %v1200
    %1301 = vmatprep.subr.mxu0 0.0
    %1302 = vmatpush1.msra.mxu0 %v1201
    %1303 = vmatprep.subr.mxu0 0.0
    %1304 = vmatpush1.msra.mxu0 %v1202
    %1305 = vmatprep.subr.mxu0 0.0
    %1306 = vmatpush1.msra.mxu0 %v1203
    %1307 = vmatprep.subr.mxu0 0.0
    %1308 = vmatpush1.msra.mxu0 %v1204
    %1309 = vmatprep.subr.mxu0 0.0
    %1310 = vmatpush1.msra.mxu0 %v1205
    %1311 = vmatprep.subr.mxu0 0.0
    %1312 = vmatpush1.msra.mxu0 %v1206
    %1313 = vmatprep.subr.mxu0 0.0
    %1314 = vmatpush1.msra.mxu0 %v1207
    %1315 = vmatprep.subr.mxu0 0.0
    %1316 = vmatpush1.msra.mxu0 %v1208
    %1317 = vmatprep.subr.mxu0 0.0
    %1318 = vmatpush1.msra.mxu0 %v1209
    %1319 = vmatprep.subr.mxu0 0.0
    %1320 = vmatpush1.msra.mxu0 %v1210
    %1321 = vmatprep.subr.mxu0 0.0
    %1322 = vmatpush1.msra.mxu0 %v1211
    %1323 = vmatprep.subr.mxu0 0.0
    %1324 = vmatpush1.msra.mxu0 %v1212
    %1325 = vmatprep.subr.mxu0 0.0
    %1326 = vmatpush1.msra.mxu0 %v1213
    %1327 = vmatprep.subr.mxu0 0.0
    %1328 = vmatpush1.msra.mxu0 %v1214
    %1329 = vmatprep.subr.mxu0 0.0
    %1330 = vmatpush1.msra.mxu0 %v1215
    %1331 = vmatprep.subr.mxu0 0.0
    %1332 = vmatpush1.msra.mxu0 0.0
    %1333 = vmatprep.subr.mxu0 0.0
    %1334 = vmatpush1.msra.mxu0 0.0
    %1335 = vmatprep.subr.mxu0 0.0
    %1336 = vmatpush1.msra.mxu0 0.0
    %1337 = vmatprep.subr.mxu0 0.0
    %1338 = vmatpush1.msra.mxu0 0.0
    %1339 = vmatprep.subr.mxu0 0.0
    %1340 = vmatpush1.msra.mxu0 0.0
    %1341 = vmatprep.subr.mxu0 0.0
    %1342 = vmatpush1.msra.mxu0 0.0
    %1343 = vmatprep.subr.mxu0 0.0
    %1344 = vmatpush1.msra.mxu0 0.0
    %1345 = vmatprep.subr.mxu0 0.0
    %1346 = vmatpush1.msra.mxu0 0.0
    %1347 = vmatprep.subr.mxu0 0.0
    %1348 = vmatpush1.msra.mxu0 0.0
    %1349 = vmatprep.subr.mxu0 0.0
    %1350 = vmatpush1.msra.mxu0 0.0
    %1351 = vmatprep.subr.mxu0 0.0
    %1352 = vmatpush1.msra.mxu0 0.0
    %1353 = vmatprep.subr.mxu0 0.0
    %1354 = vmatpush1.msra.mxu0 0.0
    %1355 = vmatprep.subr.mxu0 0.0
    %1356 = vmatpush1.msra.mxu0 0.0
    %1357 = vmatprep.subr.mxu0 0.0
    %1358 = vmatpush1.msra.mxu0 0.0
    %1359 = vmatprep.subr.mxu0 0.0
    %1360 = vmatpush1.msra.mxu0 0.0
    %1361 = vmatprep.subr.mxu0 0.0
    %1362 = vmatpush1.msra.mxu0 0.0
    %1363 = vmatprep.mubr.f32.mxu0 0.0
    %1364 = vmatmul.mubr.f32.gmra.mrb[0].mxu0 %v1165
    %v1365 = vpop.f32.mrb[0].mxu0
    %v1366 = vadd.f32 %v1291, %v1365
    %v1367 = vpop.f32.mrb[0].mxu0
    %1368 = vmatprep.mubr.f32.mxu0 0.0
    %1369 = vmatmul.mubr.f32.gmra.mrb[0].mxu0 %v1166
    %v1370 = vpop.f32.mrb[0].mxu0
    %v1371 = vadd.f32 %v1296, %v1370
    %v1372 = vpop.f32.mrb[0].mxu0
    %1373 = vdwg.mxu0
    %v1374 = vmax.f32 %v1366, 0.0
    %v1375 = vmax.f32 %v1371, 0.0
    %1376 = vst [vmem:[#allocation2 + $0x8] sm:$0xff] %v1374
    %1377 = vst [vmem:[#allocation2 + $0x10] sm:$0xff] %v1375
    %v1378 = vld [vmem:[#allocation2 + $0x7] sm:$0xff]
    %v1379 = vld [vmem:[#allocation2 + $0xf] sm:$0xff]
    %v1380 = vld [vmem:[#allocation2 + $0x8] sm:$0xff]
    %v1381 = vld [vmem:[#allocation2 + $0x10] sm:$0xff]
    %v1382 = vld [vmem:[#allocation2 + $0x9] sm:$0xff]
    %v1383 = vld [vmem:[#allocation2 + $0x11] sm:$0xff]
    %s1384 = scalar_lea.vmem [#allocation3], 2304
    %v1385 = vld [vmem:[%s1384] sm:$0xff]
    %v1386 = vld [vmem:[%s1384 + $0x8] sm:$0xff]
    %v1387 = vld [vmem:[%s1384 + $0x10] sm:$0xff]
    %v1388 = vld [vmem:[%s1384 + $0x18] sm:$0xff]
    %v1389 = vld [vmem:[%s1384 + $0x20] sm:$0xff]
    %v1390 = vld [vmem:[%s1384 + $0x28] sm:$0xff]
    %v1391 = vld [vmem:[%s1384 + $0x30] sm:$0xff]
    %v1392 = vld [vmem:[%s1384 + $0x38] sm:$0xff]
    %v1393 = vld [vmem:[%s1384 + $0x40] sm:$0xff]
    %v1394 = vld [vmem:[%s1384 + $0x48] sm:$0xff]
    %v1395 = vld [vmem:[%s1384 + $0x50] sm:$0xff]
    %v1396 = vld [vmem:[%s1384 + $0x58] sm:$0xff]
    %v1397 = vld [vmem:[%s1384 + $0x60] sm:$0xff]
    %v1398 = vld [vmem:[%s1384 + $0x68] sm:$0xff]
    %v1399 = vld [vmem:[%s1384 + $0x70] sm:$0xff]
    %v1400 = vld [vmem:[%s1384 + $0x78] sm:$0xff]
    %v1401 = vld [vmem:[%s1384 + $0x80] sm:$0xff]
    %v1402 = vld [vmem:[%s1384 + $0x88] sm:$0xff]
    %v1403 = vld [vmem:[%s1384 + $0x90] sm:$0xff]
    %v1404 = vld [vmem:[%s1384 + $0x98] sm:$0xff]
    %v1405 = vld [vmem:[%s1384 + $0xa0] sm:$0xff]
    %v1406 = vld [vmem:[%s1384 + $0xa8] sm:$0xff]
    %v1407 = vld [vmem:[%s1384 + $0xb0] sm:$0xff]
    %v1408 = vld [vmem:[%s1384 + $0xb8] sm:$0xff]
    %v1409 = vld [vmem:[%s1384 + $0xc0] sm:$0xff]
    %v1410 = vld [vmem:[%s1384 + $0xc8] sm:$0xff]
    %v1411 = vld [vmem:[%s1384 + $0xd0] sm:$0xff]
    %v1412 = vld [vmem:[%s1384 + $0xd8] sm:$0xff]
    %v1413 = vld [vmem:[%s1384 + $0xe0] sm:$0xff]
    %v1414 = vld [vmem:[%s1384 + $0xe8] sm:$0xff]
    %v1415 = vld [vmem:[%s1384 + $0xf0] sm:$0xff]
    %v1416 = vld [vmem:[%s1384 + $0xf8] sm:$0xff]
    %v1417 = vld [vmem:[%s1384 + $0x100] sm:$0xff]
    %v1418 = vld [vmem:[%s1384 + $0x108] sm:$0xff]
    %v1419 = vld [vmem:[%s1384 + $0x110] sm:$0xff]
    %v1420 = vld [vmem:[%s1384 + $0x118] sm:$0xff]
    %v1421 = vld [vmem:[%s1384 + $0x120] sm:$0xff]
    %v1422 = vld [vmem:[%s1384 + $0x128] sm:$0xff]
    %v1423 = vld [vmem:[%s1384 + $0x130] sm:$0xff]
    %v1424 = vld [vmem:[%s1384 + $0x138] sm:$0xff]
    %v1425 = vld [vmem:[%s1384 + $0x140] sm:$0xff]
    %v1426 = vld [vmem:[%s1384 + $0x148] sm:$0xff]
    %v1427 = vld [vmem:[%s1384 + $0x150] sm:$0xff]
    %v1428 = vld [vmem:[%s1384 + $0x158] sm:$0xff]
    %v1429 = vld [vmem:[%s1384 + $0x160] sm:$0xff]
    %v1430 = vld [vmem:[%s1384 + $0x168] sm:$0xff]
    %v1431 = vld [vmem:[%s1384 + $0x170] sm:$0xff]
    %v1432 = vld [vmem:[%s1384 + $0x178] sm:$0xff]
    %s1433 = scalar_lea.vmem [#allocation5], 6
    %v1434 = vld [vmem:[%s1433] sm:$0x1]
    %v1436 = vlaneseq
    %v1437 = vshrl.u32 %v1436, 7
    %v1438 = vsub.s32 0, %v1437
    %v1439 = vrot.slane %v1434, %v1438
    %1441 = vmatprep.subr.mxu0 0.0
    %1442 = vmatpush1.msra.mxu0 %v1385
    %1443 = vmatprep.subr.mxu0 0.0
    %1444 = vmatpush1.msra.mxu0 %v1386
    %1445 = vmatprep.subr.mxu0 0.0
    %1446 = vmatpush1.msra.mxu0 %v1387
    %1447 = vmatprep.subr.mxu0 0.0
    %1448 = vmatpush1.msra.mxu0 %v1388
    %1449 = vmatprep.subr.mxu0 0.0
    %1450 = vmatpush1.msra.mxu0 %v1389
    %1451 = vmatprep.subr.mxu0 0.0
    %1452 = vmatpush1.msra.mxu0 %v1390
    %1453 = vmatprep.subr.mxu0 0.0
    %1454 = vmatpush1.msra.mxu0 %v1391
    %1455 = vmatprep.subr.mxu0 0.0
    %1456 = vmatpush1.msra.mxu0 %v1392
    %1457 = vmatprep.subr.mxu0 0.0
    %1458 = vmatpush1.msra.mxu0 %v1393
    %1459 = vmatprep.subr.mxu0 0.0
    %1460 = vmatpush1.msra.mxu0 %v1394
    %1461 = vmatprep.subr.mxu0 0.0
    %1462 = vmatpush1.msra.mxu0 %v1395
    %1463 = vmatprep.subr.mxu0 0.0
    %1464 = vmatpush1.msra.mxu0 %v1396
    %1465 = vmatprep.subr.mxu0 0.0
    %1466 = vmatpush1.msra.mxu0 %v1397
    %1467 = vmatprep.subr.mxu0 0.0
    %1468 = vmatpush1.msra.mxu0 %v1398
    %1469 = vmatprep.subr.mxu0 0.0
    %1470 = vmatpush1.msra.mxu0 %v1399
    %1471 = vmatprep.subr.mxu0 0.0
    %1472 = vmatpush1.msra.mxu0 %v1400
    %1473 = vmatprep.subr.mxu0 0.0
    %1474 = vmatpush1.msra.mxu0 %v1401
    %1475 = vmatprep.subr.mxu0 0.0
    %1476 = vmatpush1.msra.mxu0 %v1402
    %1477 = vmatprep.subr.mxu0 0.0
    %1478 = vmatpush1.msra.mxu0 %v1403
    %1479 = vmatprep.subr.mxu0 0.0
    %1480 = vmatpush1.msra.mxu0 %v1404
    %1481 = vmatprep.subr.mxu0 0.0
    %1482 = vmatpush1.msra.mxu0 %v1405
    %1483 = vmatprep.subr.mxu0 0.0
    %1484 = vmatpush1.msra.mxu0 %v1406
    %1485 = vmatprep.subr.mxu0 0.0
    %1486 = vmatpush1.msra.mxu0 %v1407
    %1487 = vmatprep.subr.mxu0 0.0
    %1488 = vmatpush1.msra.mxu0 %v1408
    %1489 = vmatprep.subr.mxu0 0.0
    %1490 = vmatpush1.msra.mxu0 %v1409
    %1491 = vmatprep.subr.mxu0 0.0
    %1492 = vmatpush1.msra.mxu0 %v1410
    %1493 = vmatprep.subr.mxu0 0.0
    %1494 = vmatpush1.msra.mxu0 %v1411
    %1495 = vmatprep.subr.mxu0 0.0
    %1496 = vmatpush1.msra.mxu0 %v1412
    %1497 = vmatprep.subr.mxu0 0.0
    %1498 = vmatpush1.msra.mxu0 %v1413
    %1499 = vmatprep.subr.mxu0 0.0
    %1500 = vmatpush1.msra.mxu0 %v1414
    %1501 = vmatprep.subr.mxu0 0.0
    %1502 = vmatpush1.msra.mxu0 %v1415
    %1503 = vmatprep.subr.mxu0 0.0
    %1504 = vmatpush1.msra.mxu0 %v1416
    %1505 = vmatprep.mubr.f32.mxu0 %v1380
    %1506 = vmatmul.mubr.f32.gmra.mrb[0].mxu0 %v1378
    %v1507 = vpop.f32.mrb[0].mxu0
    %v1508 = vadd.f32 %v1439, %v1507
    %v1509 = vpop.f32.mrb[0].mxu0
    %1510 = vmatprep.mubr.f32.mxu0 %v1381
    %1511 = vmatmul.mubr.f32.gmra.mrb[0].mxu0 %v1379
    %v1512 = vpop.f32.mrb[0].mxu0
    %v1513 = vadd.f32 %v1439, %v1512
    %v1514 = vpop.f32.mrb[0].mxu0
    %1515 = vdwg.mxu0
    %1516 = vmatprep.subr.mxu0 0.0
    %1517 = vmatpush1.msra.mxu0 %v1417
    %1518 = vmatprep.subr.mxu0 0.0
    %1519 = vmatpush1.msra.mxu0 %v1418
    %1520 = vmatprep.subr.mxu0 0.0
    %1521 = vmatpush1.msra.mxu0 %v1419
    %1522 = vmatprep.subr.mxu0 0.0
    %1523 = vmatpush1.msra.mxu0 %v1420
    %1524 = vmatprep.subr.mxu0 0.0
    %1525 = vmatpush1.msra.mxu0 %v1421
    %1526 = vmatprep.subr.mxu0 0.0
    %1527 = vmatpush1.msra.mxu0 %v1422
    %1528 = vmatprep.subr.mxu0 0.0
    %1529 = vmatpush1.msra.mxu0 %v1423
    %1530 = vmatprep.subr.mxu0 0.0
    %1531 = vmatpush1.msra.mxu0 %v1424
    %1532 = vmatprep.subr.mxu0 0.0
    %1533 = vmatpush1.msra.mxu0 %v1425
    %1534 = vmatprep.subr.mxu0 0.0
    %1535 = vmatpush1.msra.mxu0 %v1426
    %1536 = vmatprep.subr.mxu0 0.0
    %1537 = vmatpush1.msra.mxu0 %v1427
    %1538 = vmatprep.subr.mxu0 0.0
    %1539 = vmatpush1.msra.mxu0 %v1428
    %1540 = vmatprep.subr.mxu0 0.0
    %1541 = vmatpush1.msra.mxu0 %v1429
    %1542 = vmatprep.subr.mxu0 0.0
    %1543 = vmatpush1.msra.mxu0 %v1430
    %1544 = vmatprep.subr.mxu0 0.0
    %1545 = vmatpush1.msra.mxu0 %v1431
    %1546 = vmatprep.subr.mxu0 0.0
    %1547 = vmatpush1.msra.mxu0 %v1432
    %1548 = vmatprep.subr.mxu0 0.0
    %1549 = vmatpush1.msra.mxu0 0.0
    %1550 = vmatprep.subr.mxu0 0.0
    %1551 = vmatpush1.msra.mxu0 0.0
    %1552 = vmatprep.subr.mxu0 0.0
    %1553 = vmatpush1.msra.mxu0 0.0
    %1554 = vmatprep.subr.mxu0 0.0
    %1555 = vmatpush1.msra.mxu0 0.0
    %1556 = vmatprep.subr.mxu0 0.0
    %1557 = vmatpush1.msra.mxu0 0.0
    %1558 = vmatprep.subr.mxu0 0.0
    %1559 = vmatpush1.msra.mxu0 0.0
    %1560 = vmatprep.subr.mxu0 0.0
    %1561 = vmatpush1.msra.mxu0 0.0
    %1562 = vmatprep.subr.mxu0 0.0
    %1563 = vmatpush1.msra.mxu0 0.0
    %1564 = vmatprep.subr.mxu0 0.0
    %1565 = vmatpush1.msra.mxu0 0.0
    %1566 = vmatprep.subr.mxu0 0.0
    %1567 = vmatpush1.msra.mxu0 0.0
    %1568 = vmatprep.subr.mxu0 0.0
    %1569 = vmatpush1.msra.mxu0 0.0
    %1570 = vmatprep.subr.mxu0 0.0
    %1571 = vmatpush1.msra.mxu0 0.0
    %1572 = vmatprep.subr.mxu0 0.0
    %1573 = vmatpush1.msra.mxu0 0.0
    %1574 = vmatprep.subr.mxu0 0.0
    %1575 = vmatpush1.msra.mxu0 0.0
    %1576 = vmatprep.subr.mxu0 0.0
    %1577 = vmatpush1.msra.mxu0 0.0
    %1578 = vmatprep.subr.mxu0 0.0
    %1579 = vmatpush1.msra.mxu0 0.0
    %1580 = vmatprep.mubr.f32.mxu0 0.0
    %1581 = vmatmul.mubr.f32.gmra.mrb[0].mxu0 %v1382
    %v1582 = vpop.f32.mrb[0].mxu0
    %v1583 = vadd.f32 %v1508, %v1582
    %v1584 = vpop.f32.mrb[0].mxu0
    %1585 = vmatprep.mubr.f32.mxu0 0.0
    %1586 = vmatmul.mubr.f32.gmra.mrb[0].mxu0 %v1383
    %v1587 = vpop.f32.mrb[0].mxu0
    %v1588 = vadd.f32 %v1513, %v1587
    %v1589 = vpop.f32.mrb[0].mxu0
    %1590 = vdwg.mxu0
    %v1591 = vmax.f32 %v1583, 0.0
    %v1592 = vmax.f32 %v1588, 0.0
    %1593 = vst [vmem:[#allocation2 + $0x8] sm:$0xff] %v1591
    %1594 = vst [vmem:[#allocation2 + $0x10] sm:$0xff] %v1592
    %v1595 = vld [vmem:[#allocation2 + $0x8] sm:$0xff]
    %v1596 = vld [vmem:[#allocation2 + $0x10] sm:$0xff]
    %v1597 = vld [vmem:[#allocation7] sm:$0xff]
    %v1598 = vld [vmem:[#allocation7 + $0x8] sm:$0xff]
    %v1599 = vld [vmem:[#allocation7 + $0x10] sm:$0xff]
    %v1600 = vld [vmem:[#allocation7 + $0x18] sm:$0xff]
    %v1601 = vld [vmem:[#allocation7 + $0x20] sm:$0xff]
    %v1602 = vld [vmem:[#allocation7 + $0x28] sm:$0xff]
    %v1603 = vld [vmem:[#allocation7 + $0x30] sm:$0xff]
    %v1604 = vld [vmem:[#allocation7 + $0x38] sm:$0xff]
    %v1605 = vld [vmem:[#allocation7 + $0x40] sm:$0xff]
    %v1606 = vld [vmem:[#allocation7 + $0x48] sm:$0xff]
    %v1607 = vld [vmem:[#allocation7 + $0x50] sm:$0xff]
    %v1608 = vld [vmem:[#allocation7 + $0x58] sm:$0xff]
    %v1609 = vld [vmem:[#allocation7 + $0x60] sm:$0xff]
    %v1610 = vld [vmem:[#allocation7 + $0x68] sm:$0xff]
    %v1611 = vld [vmem:[#allocation7 + $0x70] sm:$0xff]
    %v1612 = vld [vmem:[#allocation7 + $0x78] sm:$0xff]
    %1613 = vmatprep.subr.mxu0 0.0
    %1614 = vmatpush1.msra.mxu0 %v1597
    %1615 = vmatprep.subr.mxu0 0.0
    %1616 = vmatpush1.msra.mxu0 %v1598
    %1617 = vmatprep.subr.mxu0 0.0
    %1618 = vmatpush1.msra.mxu0 %v1599
    %1619 = vmatprep.subr.mxu0 0.0
    %1620 = vmatpush1.msra.mxu0 %v1600
    %1621 = vmatprep.subr.mxu0 0.0
    %1622 = vmatpush1.msra.mxu0 %v1601
    %1623 = vmatprep.subr.mxu0 0.0
    %1624 = vmatpush1.msra.mxu0 %v1602
    %1625 = vmatprep.subr.mxu0 0.0
    %1626 = vmatpush1.msra.mxu0 %v1603
    %1627 = vmatprep.subr.mxu0 0.0
    %1628 = vmatpush1.msra.mxu0 %v1604
    %1629 = vmatprep.subr.mxu0 0.0
    %1630 = vmatpush1.msra.mxu0 %v1605
    %1631 = vmatprep.subr.mxu0 0.0
    %1632 = vmatpush1.msra.mxu0 %v1606
    %1633 = vmatprep.subr.mxu0 0.0
    %1634 = vmatpush1.msra.mxu0 %v1607
    %1635 = vmatprep.subr.mxu0 0.0
    %1636 = vmatpush1.msra.mxu0 %v1608
    %1637 = vmatprep.subr.mxu0 0.0
    %1638 = vmatpush1.msra.mxu0 %v1609
    %1639 = vmatprep.subr.mxu0 0.0
    %1640 = vmatpush1.msra.mxu0 %v1610
    %1641 = vmatprep.subr.mxu0 0.0
    %1642 = vmatpush1.msra.mxu0 %v1611
    %1643 = vmatprep.subr.mxu0 0.0
    %1644 = vmatpush1.msra.mxu0 %v1612
    %1645 = vmatprep.subr.mxu0 0.0
    %1646 = vmatpush1.msra.mxu0 0.0
    %1647 = vmatprep.subr.mxu0 0.0
    %1648 = vmatpush1.msra.mxu0 0.0
    %1649 = vmatprep.subr.mxu0 0.0
    %1650 = vmatpush1.msra.mxu0 0.0
    %1651 = vmatprep.subr.mxu0 0.0
    %1652 = vmatpush1.msra.mxu0 0.0
    %1653 = vmatprep.subr.mxu0 0.0
    %1654 = vmatpush1.msra.mxu0 0.0
    %1655 = vmatprep.subr.mxu0 0.0
    %1656 = vmatpush1.msra.mxu0 0.0
    %1657 = vmatprep.subr.mxu0 0.0
    %1658 = vmatpush1.msra.mxu0 0.0
    %1659 = vmatprep.subr.mxu0 0.0
    %1660 = vmatpush1.msra.mxu0 0.0
    %1661 = vmatprep.subr.mxu0 0.0
    %1662 = vmatpush1.msra.mxu0 0.0
    %1663 = vmatprep.subr.mxu0 0.0
    %1664 = vmatpush1.msra.mxu0 0.0
    %1665 = vmatprep.subr.mxu0 0.0
    %1666 = vmatpush1.msra.mxu0 0.0
    %1667 = vmatprep.subr.mxu0 0.0
    %1668 = vmatpush1.msra.mxu0 0.0
    %1669 = vmatprep.subr.mxu0 0.0
    %1670 = vmatpush1.msra.mxu0 0.0
    %1671 = vmatprep.subr.mxu0 0.0
    %1672 = vmatpush1.msra.mxu0 0.0
    %1673 = vmatprep.subr.mxu0 0.0
    %1674 = vmatpush1.msra.mxu0 0.0
    %1675 = vmatprep.subr.mxu0 0.0
    %1676 = vmatpush1.msra.mxu0 0.0
    %1677 = vmatprep.mubr.f32.mxu0 0.0
    %1678 = vmatmul.mubr.f32.gmra.mrb[0].mxu0 %v1595
    %v1679 = vpop.f32.mrb[0].mxu0
    %v1680 = vadd.f32 0.0, %v1679
    %v1681 = vpop.f32.mrb[0].mxu0
    %1682 = vmatprep.mubr.f32.mxu0 0.0
    %1683 = vmatmul.mubr.f32.gmra.mrb[0].mxu0 %v1596
    %v1684 = vpop.f32.mrb[0].mxu0
    %v1685 = vadd.f32 0.0, %v1684
    %v1686 = vpop.f32.mrb[0].mxu0
    %1687 = vdwg.mxu0
    %v1688 = vld [vmem:[%s0] sm:$0xff]
    %v1689 = vld [vmem:[%s0 + $0x8] sm:$0xff]
    %v1690 = vadd.f32 %v1688, %v1680
    %v1691 = vadd.f32 %v1689, %v1685
    %v1692 = vld [vmem:[#allocation8] sm:$0x1]
    %v1694 = vlaneseq
    %v1695 = vshrl.u32 %v1694, 7
    %v1696 = vsub.s32 0, %v1695
    %v1697 = vrot.slane %v1692, %v1696
    %v1699 = vadd.f32 %v1690, %v1697
    %v1700 = vadd.f32 %v1691, %v1697
    %1701 = vst [vmem:[%s5] sm:$0xff] %v1699
    %1702 = vst [vmem:[%s5 + $0x8] sm:$0xff] %v1700
    // Predicated region
    $region38: #{mdcl_forward.1} parent=1 // pred_check
      _
    $region39: #{mdcl_forward.1} parent=1 // pred_check_branch
      %1704 = sbr.rel (0) target = $region41
    $region40: #{mdcl_forward.1} parent=1 // pred_region
      _
    $region41: #{mdcl_forward.1} parent=1 // pred_fallthru
      _
    // Predicated region
    $region42: #{mdcl_forward.1} parent=1 // pred_check
      _
    $region43: #{mdcl_forward.1} parent=1 // pred_check_branch
      %1706 = sbr.rel (0) target = $region45
    $region44: #{mdcl_forward.1} parent=1 // pred_region
      _
    $region45: #{mdcl_forward.1} parent=1 // pred_fallthru
      _
    %1707 = vsyncpa [#allocation4], 1
    %1708 = vsyncpa [#allocation6], 1
    %1709 = vsyncpa [#allocation9], 1

</llo_original>
